<compile_context>
chip_gen: v6e
topology: v6e:2x2x1
jax: 0.10.0
libtpu: 0.0.40
codegen_flags: <defaults>
</compile_context>

<pallas_src>
import math
from functools import partial

import jax
import jax.numpy as jnp
from jax.experimental import pallas as pl
from jax.experimental.pallas import tpu as pltpu


# ----------------------------------------------------------------------------
# Fused kernel: L x (GraphConv score -> top-k mask -> rescale) + mean/max pool
#               + final Linear, all in one invocation.
# ----------------------------------------------------------------------------
def _fused_sagpool_kernel(scal_ref, x_ref, adj_ref, w_pack_ref, lin_w_ref,
                          lin_b_ref, out_ref, *, ks):
    """scal_ref  : SMEM [2L]     = [b_rel_0, sgn_0, b_rel_1, sgn_1, ...]
       x_ref     : VMEM [N, D]
       adj_ref   : VMEM [N, N]   adj[i, j] = weight of edge j -> i
       w_pack_ref: VMEM [D, 2L]  columns (w_rel_l, w_root_l) per layer
       lin_w_ref : VMEM [2D, out]   (torch Linear weight, transposed)
       lin_b_ref : VMEM [1, out]
       out_ref   : VMEM [1, out]
       ks        : static tuple, ks[l] = #nodes kept after layer l
    """
    n, d = x_ref.shape
    x = x_ref[...]                                                   # [N, D]
    adj = adj_ref[...]                                               # [N, N]

    row_idx = jax.lax.broadcasted_iota(jnp.int32, (n, 1), 0).astype(jnp.float32)
    neg_inf = jnp.float32(-jnp.inf)
    alive = jnp.ones((n, 1), jnp.float32)                            # node-alive mask

    for l, k in enumerate(ks):
        # GraphConv(embed_dim -> 1), reordered: project to 1 channel BEFORE the
        # adjacency matmul ([N,N]x[N,1] instead of [N,N]x[N,D]); one packed dot
        # yields both x@w_rel and x@w_root.
        w_l = w_pack_ref[:, 2 * l:2 * l + 2]                         # [D, 2]
        yr = jnp.dot(x, w_l, preferred_element_type=jnp.float32)     # [N, 2]
        y = yr[:, 0:1]                                               # x @ w_rel
        r = yr[:, 1:2]                                               # x @ w_root
        b_l = scal_ref[2 * l]                                        # SMEM scalar
        sgn_l = scal_ref[2 * l + 1]                                  # sign(w_sel)
        attn = jnp.dot(adj, y, preferred_element_type=jnp.float32) + r + b_l

        # SelectTopK (in_channels=1, act=tanh): score = tanh(attn * w / |w|).
        # Dead nodes have x == 0, so zeroing dropped rows of x is exactly
        # equivalent to FilterEdges + row gather; adj is never touched.
        score = jnp.tanh(attn * sgn_l)                               # [N, 1]

        # Top-k over still-alive nodes: iterative argmax, ties -> lowest index.
        masked = jnp.where(alive > 0.0, score, neg_inf)
        sel = jnp.zeros((n, 1), jnp.float32)
        for _ in range(k):                                           # k static
            m = jnp.max(masked, axis=0, keepdims=True)               # [1, 1]
            cand = jnp.where(masked == m, row_idx, jnp.float32(n))
            j = jnp.min(cand, axis=0, keepdims=True)                 # [1, 1]
            picked = (row_idx == j).astype(jnp.float32)              # one-hot [N,1]
            sel = sel + picked
            masked = jnp.where(picked > 0.0, neg_inf, masked)

        # x' = x[perm] * score[perm]; dropped nodes -> 0 rows.
        x = x * (score * sel)
        alive = sel

    # Readout over the ks[-1] surviving nodes: dropped rows contribute 0 to the
    # sum and -inf to the max; mean divides by the true (static) node count.
    k_final = ks[-1]
    mean = jnp.sum(x, axis=0, keepdims=True) * jnp.float32(1.0 / k_final)   # [1, D]
    mx = jnp.max(jnp.where(alive > 0.0, x, neg_inf), axis=0, keepdims=True)  # [1, D]
    # Linear on cat([mean, max]) == mean @ W[:D] + max @ W[D:]  (static weight split)
    out = (jnp.dot(mean, lin_w_ref[:d, :], preferred_element_type=jnp.float32)
           + jnp.dot(mx, lin_w_ref[d:, :], preferred_element_type=jnp.float32)
           + lin_b_ref[...])
    out_ref[...] = out


# ----------------------------------------------------------------------------
# Wrapper: pack params, compute static per-layer keep counts, one pallas_call.
# ----------------------------------------------------------------------------
def sag_pool_readout_forward(x, adj, params, keep_ratio=0.8):
    n, d = x.shape
    layer_num = len(params["pools"])
    out_dim = params["lin_w"].shape[1]

    # Static per-layer keep counts (PyG SelectTopK: k = ceil(ratio * num_nodes)).
    ks = []
    cur = n
    for _ in range(layer_num):
        cur = int(math.ceil(keep_ratio * cur))
        ks.append(cur)
    ks = tuple(ks)

    # Pack per-layer GraphConv weights [D, 2L] and scalar params [2L].
    w_cols, scal = [], []
    for p in params["pools"]:
        w_cols.append(p["w_rel"])                                    # [D, 1]
        w_cols.append(p["w_root"])                                   # [D, 1]
        w_sel = p["w_sel"].reshape(())
        sgn = jnp.where(w_sel == 0, jnp.float32(1.0), jnp.sign(w_sel))
        scal.append(p["b_rel"].reshape(()))
        scal.append(sgn)
    w_pack = jnp.concatenate(w_cols, axis=1).astype(jnp.float32)     # [D, 2L]
    scal = jnp.stack(scal).astype(jnp.float32)                       # [2L]

    vmem = pltpu.MemorySpace.VMEM
    smem = pltpu.MemorySpace.SMEM
    return pl.pallas_call(
        partial(_fused_sagpool_kernel, ks=ks),
        out_shape=jax.ShapeDtypeStruct((1, out_dim), jnp.float32),
        in_specs=[
            pl.BlockSpec(memory_space=smem),    # scal   (scalar params -> SMEM)
            pl.BlockSpec(memory_space=vmem),    # x
            pl.BlockSpec(memory_space=vmem),    # adj
            pl.BlockSpec(memory_space=vmem),    # w_pack
            pl.BlockSpec(memory_space=vmem),    # lin_w
            pl.BlockSpec(memory_space=vmem),    # lin_b
        ],
        out_specs=pl.BlockSpec(memory_space=vmem),
    )(scal, x, adj, w_pack, params["lin_w"], params["lin_b"])


# ----------------------------------------------------------------------------
# Pure-JAX reference (compaction form, mirrors the PyTorch module) for checking.
# ----------------------------------------------------------------------------
def _ref_forward(x, adj, params, keep_ratio=0.8):
    for p in params["pools"]:
        n = x.shape[0]
        attn = (adj @ x) @ p["w_rel"] + x @ p["w_root"] + p["b_rel"][0, 0]   # [n,1]
        w = p["w_sel"][0, 0]
        score = jnp.tanh(attn[:, 0] * (w / jnp.abs(w)))
        k = int(math.ceil(keep_ratio * n))
        _, perm = jax.lax.top_k(score, k)
        x = x[perm] * score[perm][:, None]
        adj = adj[perm][:, perm]
    readout = jnp.concatenate(
        [jnp.mean(x, axis=0, keepdims=True), jnp.max(x, axis=0, keepdims=True)],
        axis=1)
    return readout @ params["lin_w"] + params["lin_b"]


def init_params(key, embed_dim, out_dim, layer_num):
    pools = []
    for _ in range(layer_num):
        key, k1, k2, k3, k4 = jax.random.split(key, 5)
        pools.append({
            # GraphConv(embed_dim, 1): lin_rel (with bias) + lin_root (no bias),
            # stored pre-transposed as [D, 1] for the kernel.
            "w_rel": 0.1 * jax.random.normal(k1, (embed_dim, 1), jnp.float32),
            "w_root": 0.1 * jax.random.normal(k2, (embed_dim, 1), jnp.float32),
            "b_rel": 0.1 * jax.random.normal(k3, (1, 1), jnp.float32),
            # SelectTopK weight, shape (1, 1) for in_channels=1 (kept nonzero)
            "w_sel": jnp.abs(jax.random.normal(k4, (1, 1), jnp.float32)) + 0.1,
        })
    key, kw, kb = jax.random.split(key, 3)
    return {
        "pools": pools,
        # torch Linear(2*embed_dim, out_dim), weight stored transposed [2D, out]
        "lin_w": 0.1 * jax.random.normal(kw, (2 * embed_dim, out_dim), jnp.float32),
        "lin_b": 0.1 * jax.random.normal(kb, (1, out_dim), jnp.float32),
    }


if __name__ == "__main__":
    N, EMBED_DIM, OUT_DIM, LAYER_NUM = 16, 32, 8, 2

    key = jax.random.PRNGKey(0)
    kx, ka, kp = jax.random.split(key, 3)

    x = jax.random.normal(kx, (N, EMBED_DIM), jnp.float32)
    a = (jax.random.uniform(ka, (N, N)) < 0.3).astype(jnp.float32)
    adj = jnp.maximum(a, a.T)          # symmetric dense adjacency (single graph)

    params = init_params(kp, EMBED_DIM, OUT_DIM, LAYER_NUM)

    out = sag_pool_readout_forward(x, adj, params, keep_ratio=0.8)
    out = jax.block_until_ready(out)

    assert out.shape == (1, OUT_DIM)
    assert jnp.all(jnp.isfinite(out))

    ref = _ref_forward(x, adj, params, keep_ratio=0.8)
    assert jnp.allclose(out, ref, atol=1e-3, rtol=1e-3)

    print("KERNEL_OK")
</pallas_src>

<mosaic_0001>
module attributes {stable_mosaic.version = 11 : i64} {
  func.func @_fused_sagpool_kernel(%arg0: memref<4xf32, #tpu.memory_space<smem>>, %arg1: memref<16x32xf32, #tpu.memory_space<vmem>>, %arg2: memref<16x16xf32, #tpu.memory_space<vmem>>, %arg3: memref<32x4xf32, #tpu.memory_space<vmem>>, %arg4: memref<64x8xf32, #tpu.memory_space<vmem>>, %arg5: memref<1x8xf32, #tpu.memory_space<vmem>>, %arg6: memref<1x8xf32, #tpu.memory_space<vmem>>) attributes {dimension_semantics = [], scalar_prefetch = 0 : i64, scratch_operands = 0 : i64, tpu.core_type = #tpu.core_type<tc>} {
    %c0 = arith.constant 0 : index
    %c0_0 = arith.constant 0 : index
    %0 = vector.load %arg1[%c0, %c0_0] : memref<16x32xf32, #tpu.memory_space<vmem>>, vector<16x32xf32>
    %c0_1 = arith.constant 0 : index
    %c0_2 = arith.constant 0 : index
    %1 = vector.load %arg2[%c0_1, %c0_2] : memref<16x16xf32, #tpu.memory_space<vmem>>, vector<16x16xf32>
    %2 = tpu.iota {dimensions = array<i32: 0>} : vector<16x1xi32>
    %3 = arith.sitofp %2 : vector<16x1xi32> to vector<16x1xf32>
    %cst = arith.constant 1.000000e+00 : f32
    %4 = vector.broadcast %cst : f32 to vector<16x1xf32>
    %c0_3 = arith.constant 0 : index
    %c0_4 = arith.constant 0 : index
    %5 = vector.load %arg3[%c0_3, %c0_4] : memref<32x4xf32, #tpu.memory_space<vmem>>, vector<32x2xf32>
    %cst_5 = arith.constant dense<0.000000e+00> : vector<16x2xf32>
    %6 = tpu.matmul %0, %5, %cst_5 {dimension_numbers = #tpu.dot_dimension_numbers<[1], [0], [0], [1], [0, 0, 1, 1], [], []>} : vector<16x32xf32>, vector<32x2xf32>, vector<16x2xf32> -> vector<16x2xf32>
    %7 = vector.extract_strided_slice %6 {offsets = [0, 0], sizes = [16, 1], strides = [1, 1]} : vector<16x2xf32> to vector<16x1xf32>
    %8 = vector.extract_strided_slice %6 {offsets = [0, 1], sizes = [16, 1], strides = [1, 1]} : vector<16x2xf32> to vector<16x1xf32>
    %c0_6 = arith.constant 0 : index
    %9 = memref.load %arg0[%c0_6] : memref<4xf32, #tpu.memory_space<smem>>
    %c1 = arith.constant 1 : index
    %10 = memref.load %arg0[%c1] : memref<4xf32, #tpu.memory_space<smem>>
    %cst_7 = arith.constant dense<0.000000e+00> : vector<16x1xf32>
    %11 = tpu.matmul %1, %7, %cst_7 {dimension_numbers = #tpu.dot_dimension_numbers<[1], [0], [0], [1], [0, 0, 1, 1], [], []>} : vector<16x16xf32>, vector<16x1xf32>, vector<16x1xf32> -> vector<16x1xf32>
    %12 = arith.addf %11, %8 : vector<16x1xf32>
    %13 = vector.broadcast %9 : f32 to vector<16x1xf32>
    %14 = arith.addf %12, %13 : vector<16x1xf32>
    %15 = vector.broadcast %10 : f32 to vector<16x1xf32>
    %16 = arith.mulf %14, %15 : vector<16x1xf32>
    %17 = math.tanh %16 : vector<16x1xf32>
    %cst_8 = arith.constant 0.000000e+00 : f32
    %18 = vector.broadcast %cst_8 : f32 to vector<16x1xf32>
    %19 = arith.cmpf ogt, %4, %18 : vector<16x1xf32>
    %cst_9 = arith.constant 0xFF800000 : f32
    %20 = vector.broadcast %cst_9 : f32 to vector<16x1xf32>
    %21 = arith.select %19, %17, %20 : vector<16x1xi1>, vector<16x1xf32>
    %cst_10 = arith.constant 0.000000e+00 : f32
    %22 = vector.broadcast %cst_10 : f32 to vector<16x1xf32>
    %cst_11 = arith.constant dense<0xFF800000> : vector<1xf32>
    %23 = vector.multi_reduction <maximumf>, %21, %cst_11 [0] : vector<16x1xf32> to vector<1xf32>
    %24 = vector.shape_cast %23 : vector<1xf32> to vector<1x1xf32>
    %25 = vector.broadcast %24 : vector<1x1xf32> to vector<16x1xf32>
    %26 = arith.cmpf oeq, %21, %25 : vector<16x1xf32>
    %cst_12 = arith.constant 1.600000e+01 : f32
    %27 = vector.broadcast %cst_12 : f32 to vector<16x1xf32>
    %28 = arith.select %26, %3, %27 : vector<16x1xi1>, vector<16x1xf32>
    %cst_13 = arith.constant dense<0x7F800000> : vector<1xf32>
    %29 = vector.multi_reduction <minimumf>, %28, %cst_13 [0] : vector<16x1xf32> to vector<1xf32>
    %30 = vector.shape_cast %29 : vector<1xf32> to vector<1x1xf32>
    %31 = vector.broadcast %30 : vector<1x1xf32> to vector<16x1xf32>
    %32 = arith.cmpf oeq, %3, %31 : vector<16x1xf32>
    %33 = arith.extui %32 : vector<16x1xi1> to vector<16x1xi32>
    %34 = arith.sitofp %33 : vector<16x1xi32> to vector<16x1xf32>
    %35 = arith.addf %22, %34 : vector<16x1xf32>
    %cst_14 = arith.constant 0.000000e+00 : f32
    %36 = vector.broadcast %cst_14 : f32 to vector<16x1xf32>
    %37 = arith.cmpf ogt, %34, %36 : vector<16x1xf32>
    %cst_15 = arith.constant 0xFF800000 : f32
    %38 = vector.broadcast %cst_15 : f32 to vector<16x1xf32>
    %39 = arith.select %37, %38, %21 : vector<16x1xi1>, vector<16x1xf32>
    %cst_16 = arith.constant dense<0xFF800000> : vector<1xf32>
    %40 = vector.multi_reduction <maximumf>, %39, %cst_16 [0] : vector<16x1xf32> to vector<1xf32>
    %41 = vector.shape_cast %40 : vector<1xf32> to vector<1x1xf32>
    %42 = vector.broadcast %41 : vector<1x1xf32> to vector<16x1xf32>
    %43 = arith.cmpf oeq, %39, %42 : vector<16x1xf32>
    %cst_17 = arith.constant 1.600000e+01 : f32
    %44 = vector.broadcast %cst_17 : f32 to vector<16x1xf32>
    %45 = arith.select %43, %3, %44 : vector<16x1xi1>, vector<16x1xf32>
    %cst_18 = arith.constant dense<0x7F800000> : vector<1xf32>
    %46 = vector.multi_reduction <minimumf>, %45, %cst_18 [0] : vector<16x1xf32> to vector<1xf32>
    %47 = vector.shape_cast %46 : vector<1xf32> to vector<1x1xf32>
    %48 = vector.broadcast %47 : vector<1x1xf32> to vector<16x1xf32>
    %49 = arith.cmpf oeq, %3, %48 : vector<16x1xf32>
    %50 = arith.extui %49 : vector<16x1xi1> to vector<16x1xi32>
    %51 = arith.sitofp %50 : vector<16x1xi32> to vector<16x1xf32>
    %52 = arith.addf %35, %51 : vector<16x1xf32>
    %cst_19 = arith.constant 0.000000e+00 : f32
    %53 = vector.broadcast %cst_19 : f32 to vector<16x1xf32>
    %54 = arith.cmpf ogt, %51, %53 : vector<16x1xf32>
    %cst_20 = arith.constant 0xFF800000 : f32
    %55 = vector.broadcast %cst_20 : f32 to vector<16x1xf32>
    %56 = arith.select %54, %55, %39 : vector<16x1xi1>, vector<16x1xf32>
    %cst_21 = arith.constant dense<0xFF800000> : vector<1xf32>
    %57 = vector.multi_reduction <maximumf>, %56, %cst_21 [0] : vector<16x1xf32> to vector<1xf32>
    %58 = vector.shape_cast %57 : vector<1xf32> to vector<1x1xf32>
    %59 = vector.broadcast %58 : vector<1x1xf32> to vector<16x1xf32>
    %60 = arith.cmpf oeq, %56, %59 : vector<16x1xf32>
    %cst_22 = arith.constant 1.600000e+01 : f32
    %61 = vector.broadcast %cst_22 : f32 to vector<16x1xf32>
    %62 = arith.select %60, %3, %61 : vector<16x1xi1>, vector<16x1xf32>
    %cst_23 = arith.constant dense<0x7F800000> : vector<1xf32>
    %63 = vector.multi_reduction <minimumf>, %62, %cst_23 [0] : vector<16x1xf32> to vector<1xf32>
    %64 = vector.shape_cast %63 : vector<1xf32> to vector<1x1xf32>
    %65 = vector.broadcast %64 : vector<1x1xf32> to vector<16x1xf32>
    %66 = arith.cmpf oeq, %3, %65 : vector<16x1xf32>
    %67 = arith.extui %66 : vector<16x1xi1> to vector<16x1xi32>
    %68 = arith.sitofp %67 : vector<16x1xi32> to vector<16x1xf32>
    %69 = arith.addf %52, %68 : vector<16x1xf32>
    %cst_24 = arith.constant 0.000000e+00 : f32
    %70 = vector.broadcast %cst_24 : f32 to vector<16x1xf32>
    %71 = arith.cmpf ogt, %68, %70 : vector<16x1xf32>
    %cst_25 = arith.constant 0xFF800000 : f32
    %72 = vector.broadcast %cst_25 : f32 to vector<16x1xf32>
    %73 = arith.select %71, %72, %56 : vector<16x1xi1>, vector<16x1xf32>
    %cst_26 = arith.constant dense<0xFF800000> : vector<1xf32>
    %74 = vector.multi_reduction <maximumf>, %73, %cst_26 [0] : vector<16x1xf32> to vector<1xf32>
    %75 = vector.shape_cast %74 : vector<1xf32> to vector<1x1xf32>
    %76 = vector.broadcast %75 : vector<1x1xf32> to vector<16x1xf32>
    %77 = arith.cmpf oeq, %73, %76 : vector<16x1xf32>
    %cst_27 = arith.constant 1.600000e+01 : f32
    %78 = vector.broadcast %cst_27 : f32 to vector<16x1xf32>
    %79 = arith.select %77, %3, %78 : vector<16x1xi1>, vector<16x1xf32>
    %cst_28 = arith.constant dense<0x7F800000> : vector<1xf32>
    %80 = vector.multi_reduction <minimumf>, %79, %cst_28 [0] : vector<16x1xf32> to vector<1xf32>
    %81 = vector.shape_cast %80 : vector<1xf32> to vector<1x1xf32>
    %82 = vector.broadcast %81 : vector<1x1xf32> to vector<16x1xf32>
    %83 = arith.cmpf oeq, %3, %82 : vector<16x1xf32>
    %84 = arith.extui %83 : vector<16x1xi1> to vector<16x1xi32>
    %85 = arith.sitofp %84 : vector<16x1xi32> to vector<16x1xf32>
    %86 = arith.addf %69, %85 : vector<16x1xf32>
    %cst_29 = arith.constant 0.000000e+00 : f32
    %87 = vector.broadcast %cst_29 : f32 to vector<16x1xf32>
    %88 = arith.cmpf ogt, %85, %87 : vector<16x1xf32>
    %cst_30 = arith.constant 0xFF800000 : f32
    %89 = vector.broadcast %cst_30 : f32 to vector<16x1xf32>
    %90 = arith.select %88, %89, %73 : vector<16x1xi1>, vector<16x1xf32>
    %cst_31 = arith.constant dense<0xFF800000> : vector<1xf32>
    %91 = vector.multi_reduction <maximumf>, %90, %cst_31 [0] : vector<16x1xf32> to vector<1xf32>
    %92 = vector.shape_cast %91 : vector<1xf32> to vector<1x1xf32>
    %93 = vector.broadcast %92 : vector<1x1xf32> to vector<16x1xf32>
    %94 = arith.cmpf oeq, %90, %93 : vector<16x1xf32>
    %cst_32 = arith.constant 1.600000e+01 : f32
    %95 = vector.broadcast %cst_32 : f32 to vector<16x1xf32>
    %96 = arith.select %94, %3, %95 : vector<16x1xi1>, vector<16x1xf32>
    %cst_33 = arith.constant dense<0x7F800000> : vector<1xf32>
    %97 = vector.multi_reduction <minimumf>, %96, %cst_33 [0] : vector<16x1xf32> to vector<1xf32>
    %98 = vector.shape_cast %97 : vector<1xf32> to vector<1x1xf32>
    %99 = vector.broadcast %98 : vector<1x1xf32> to vector<16x1xf32>
    %100 = arith.cmpf oeq, %3, %99 : vector<16x1xf32>
    %101 = arith.extui %100 : vector<16x1xi1> to vector<16x1xi32>
    %102 = arith.sitofp %101 : vector<16x1xi32> to vector<16x1xf32>
    %103 = arith.addf %86, %102 : vector<16x1xf32>
    %cst_34 = arith.constant 0.000000e+00 : f32
    %104 = vector.broadcast %cst_34 : f32 to vector<16x1xf32>
    %105 = arith.cmpf ogt, %102, %104 : vector<16x1xf32>
    %cst_35 = arith.constant 0xFF800000 : f32
    %106 = vector.broadcast %cst_35 : f32 to vector<16x1xf32>
    %107 = arith.select %105, %106, %90 : vector<16x1xi1>, vector<16x1xf32>
    %cst_36 = arith.constant dense<0xFF800000> : vector<1xf32>
    %108 = vector.multi_reduction <maximumf>, %107, %cst_36 [0] : vector<16x1xf32> to vector<1xf32>
    %109 = vector.shape_cast %108 : vector<1xf32> to vector<1x1xf32>
    %110 = vector.broadcast %109 : vector<1x1xf32> to vector<16x1xf32>
    %111 = arith.cmpf oeq, %107, %110 : vector<16x1xf32>
    %cst_37 = arith.constant 1.600000e+01 : f32
    %112 = vector.broadcast %cst_37 : f32 to vector<16x1xf32>
    %113 = arith.select %111, %3, %112 : vector<16x1xi1>, vector<16x1xf32>
    %cst_38 = arith.constant dense<0x7F800000> : vector<1xf32>
    %114 = vector.multi_reduction <minimumf>, %113, %cst_38 [0] : vector<16x1xf32> to vector<1xf32>
    %115 = vector.shape_cast %114 : vector<1xf32> to vector<1x1xf32>
    %116 = vector.broadcast %115 : vector<1x1xf32> to vector<16x1xf32>
    %117 = arith.cmpf oeq, %3, %116 : vector<16x1xf32>
    %118 = arith.extui %117 : vector<16x1xi1> to vector<16x1xi32>
    %119 = arith.sitofp %118 : vector<16x1xi32> to vector<16x1xf32>
    %120 = arith.addf %103, %119 : vector<16x1xf32>
    %cst_39 = arith.constant 0.000000e+00 : f32
    %121 = vector.broadcast %cst_39 : f32 to vector<16x1xf32>
    %122 = arith.cmpf ogt, %119, %121 : vector<16x1xf32>
    %cst_40 = arith.constant 0xFF800000 : f32
    %123 = vector.broadcast %cst_40 : f32 to vector<16x1xf32>
    %124 = arith.select %122, %123, %107 : vector<16x1xi1>, vector<16x1xf32>
    %cst_41 = arith.constant dense<0xFF800000> : vector<1xf32>
    %125 = vector.multi_reduction <maximumf>, %124, %cst_41 [0] : vector<16x1xf32> to vector<1xf32>
    %126 = vector.shape_cast %125 : vector<1xf32> to vector<1x1xf32>
    %127 = vector.broadcast %126 : vector<1x1xf32> to vector<16x1xf32>
    %128 = arith.cmpf oeq, %124, %127 : vector<16x1xf32>
    %cst_42 = arith.constant 1.600000e+01 : f32
    %129 = vector.broadcast %cst_42 : f32 to vector<16x1xf32>
    %130 = arith.select %128, %3, %129 : vector<16x1xi1>, vector<16x1xf32>
    %cst_43 = arith.constant dense<0x7F800000> : vector<1xf32>
    %131 = vector.multi_reduction <minimumf>, %130, %cst_43 [0] : vector<16x1xf32> to vector<1xf32>
    %132 = vector.shape_cast %131 : vector<1xf32> to vector<1x1xf32>
    %133 = vector.broadcast %132 : vector<1x1xf32> to vector<16x1xf32>
    %134 = arith.cmpf oeq, %3, %133 : vector<16x1xf32>
    %135 = arith.extui %134 : vector<16x1xi1> to vector<16x1xi32>
    %136 = arith.sitofp %135 : vector<16x1xi32> to vector<16x1xf32>
    %137 = arith.addf %120, %136 : vector<16x1xf32>
    %cst_44 = arith.constant 0.000000e+00 : f32
    %138 = vector.broadcast %cst_44 : f32 to vector<16x1xf32>
    %139 = arith.cmpf ogt, %136, %138 : vector<16x1xf32>
    %cst_45 = arith.constant 0xFF800000 : f32
    %140 = vector.broadcast %cst_45 : f32 to vector<16x1xf32>
    %141 = arith.select %139, %140, %124 : vector<16x1xi1>, vector<16x1xf32>
    %cst_46 = arith.constant dense<0xFF800000> : vector<1xf32>
    %142 = vector.multi_reduction <maximumf>, %141, %cst_46 [0] : vector<16x1xf32> to vector<1xf32>
    %143 = vector.shape_cast %142 : vector<1xf32> to vector<1x1xf32>
    %144 = vector.broadcast %143 : vector<1x1xf32> to vector<16x1xf32>
    %145 = arith.cmpf oeq, %141, %144 : vector<16x1xf32>
    %cst_47 = arith.constant 1.600000e+01 : f32
    %146 = vector.broadcast %cst_47 : f32 to vector<16x1xf32>
    %147 = arith.select %145, %3, %146 : vector<16x1xi1>, vector<16x1xf32>
    %cst_48 = arith.constant dense<0x7F800000> : vector<1xf32>
    %148 = vector.multi_reduction <minimumf>, %147, %cst_48 [0] : vector<16x1xf32> to vector<1xf32>
    %149 = vector.shape_cast %148 : vector<1xf32> to vector<1x1xf32>
    %150 = vector.broadcast %149 : vector<1x1xf32> to vector<16x1xf32>
    %151 = arith.cmpf oeq, %3, %150 : vector<16x1xf32>
    %152 = arith.extui %151 : vector<16x1xi1> to vector<16x1xi32>
    %153 = arith.sitofp %152 : vector<16x1xi32> to vector<16x1xf32>
    %154 = arith.addf %137, %153 : vector<16x1xf32>
    %cst_49 = arith.constant 0.000000e+00 : f32
    %155 = vector.broadcast %cst_49 : f32 to vector<16x1xf32>
    %156 = arith.cmpf ogt, %153, %155 : vector<16x1xf32>
    %cst_50 = arith.constant 0xFF800000 : f32
    %157 = vector.broadcast %cst_50 : f32 to vector<16x1xf32>
    %158 = arith.select %156, %157, %141 : vector<16x1xi1>, vector<16x1xf32>
    %cst_51 = arith.constant dense<0xFF800000> : vector<1xf32>
    %159 = vector.multi_reduction <maximumf>, %158, %cst_51 [0] : vector<16x1xf32> to vector<1xf32>
    %160 = vector.shape_cast %159 : vector<1xf32> to vector<1x1xf32>
    %161 = vector.broadcast %160 : vector<1x1xf32> to vector<16x1xf32>
    %162 = arith.cmpf oeq, %158, %161 : vector<16x1xf32>
    %cst_52 = arith.constant 1.600000e+01 : f32
    %163 = vector.broadcast %cst_52 : f32 to vector<16x1xf32>
    %164 = arith.select %162, %3, %163 : vector<16x1xi1>, vector<16x1xf32>
    %cst_53 = arith.constant dense<0x7F800000> : vector<1xf32>
    %165 = vector.multi_reduction <minimumf>, %164, %cst_53 [0] : vector<16x1xf32> to vector<1xf32>
    %166 = vector.shape_cast %165 : vector<1xf32> to vector<1x1xf32>
    %167 = vector.broadcast %166 : vector<1x1xf32> to vector<16x1xf32>
    %168 = arith.cmpf oeq, %3, %167 : vector<16x1xf32>
    %169 = arith.extui %168 : vector<16x1xi1> to vector<16x1xi32>
    %170 = arith.sitofp %169 : vector<16x1xi32> to vector<16x1xf32>
    %171 = arith.addf %154, %170 : vector<16x1xf32>
    %cst_54 = arith.constant 0.000000e+00 : f32
    %172 = vector.broadcast %cst_54 : f32 to vector<16x1xf32>
    %173 = arith.cmpf ogt, %170, %172 : vector<16x1xf32>
    %cst_55 = arith.constant 0xFF800000 : f32
    %174 = vector.broadcast %cst_55 : f32 to vector<16x1xf32>
    %175 = arith.select %173, %174, %158 : vector<16x1xi1>, vector<16x1xf32>
    %cst_56 = arith.constant dense<0xFF800000> : vector<1xf32>
    %176 = vector.multi_reduction <maximumf>, %175, %cst_56 [0] : vector<16x1xf32> to vector<1xf32>
    %177 = vector.shape_cast %176 : vector<1xf32> to vector<1x1xf32>
    %178 = vector.broadcast %177 : vector<1x1xf32> to vector<16x1xf32>
    %179 = arith.cmpf oeq, %175, %178 : vector<16x1xf32>
    %cst_57 = arith.constant 1.600000e+01 : f32
    %180 = vector.broadcast %cst_57 : f32 to vector<16x1xf32>
    %181 = arith.select %179, %3, %180 : vector<16x1xi1>, vector<16x1xf32>
    %cst_58 = arith.constant dense<0x7F800000> : vector<1xf32>
    %182 = vector.multi_reduction <minimumf>, %181, %cst_58 [0] : vector<16x1xf32> to vector<1xf32>
    %183 = vector.shape_cast %182 : vector<1xf32> to vector<1x1xf32>
    %184 = vector.broadcast %183 : vector<1x1xf32> to vector<16x1xf32>
    %185 = arith.cmpf oeq, %3, %184 : vector<16x1xf32>
    %186 = arith.extui %185 : vector<16x1xi1> to vector<16x1xi32>
    %187 = arith.sitofp %186 : vector<16x1xi32> to vector<16x1xf32>
    %188 = arith.addf %171, %187 : vector<16x1xf32>
    %cst_59 = arith.constant 0.000000e+00 : f32
    %189 = vector.broadcast %cst_59 : f32 to vector<16x1xf32>
    %190 = arith.cmpf ogt, %187, %189 : vector<16x1xf32>
    %cst_60 = arith.constant 0xFF800000 : f32
    %191 = vector.broadcast %cst_60 : f32 to vector<16x1xf32>
    %192 = arith.select %190, %191, %175 : vector<16x1xi1>, vector<16x1xf32>
    %cst_61 = arith.constant dense<0xFF800000> : vector<1xf32>
    %193 = vector.multi_reduction <maximumf>, %192, %cst_61 [0] : vector<16x1xf32> to vector<1xf32>
    %194 = vector.shape_cast %193 : vector<1xf32> to vector<1x1xf32>
    %195 = vector.broadcast %194 : vector<1x1xf32> to vector<16x1xf32>
    %196 = arith.cmpf oeq, %192, %195 : vector<16x1xf32>
    %cst_62 = arith.constant 1.600000e+01 : f32
    %197 = vector.broadcast %cst_62 : f32 to vector<16x1xf32>
    %198 = arith.select %196, %3, %197 : vector<16x1xi1>, vector<16x1xf32>
    %cst_63 = arith.constant dense<0x7F800000> : vector<1xf32>
    %199 = vector.multi_reduction <minimumf>, %198, %cst_63 [0] : vector<16x1xf32> to vector<1xf32>
    %200 = vector.shape_cast %199 : vector<1xf32> to vector<1x1xf32>
    %201 = vector.broadcast %200 : vector<1x1xf32> to vector<16x1xf32>
    %202 = arith.cmpf oeq, %3, %201 : vector<16x1xf32>
    %203 = arith.extui %202 : vector<16x1xi1> to vector<16x1xi32>
    %204 = arith.sitofp %203 : vector<16x1xi32> to vector<16x1xf32>
    %205 = arith.addf %188, %204 : vector<16x1xf32>
    %cst_64 = arith.constant 0.000000e+00 : f32
    %206 = vector.broadcast %cst_64 : f32 to vector<16x1xf32>
    %207 = arith.cmpf ogt, %204, %206 : vector<16x1xf32>
    %cst_65 = arith.constant 0xFF800000 : f32
    %208 = vector.broadcast %cst_65 : f32 to vector<16x1xf32>
    %209 = arith.select %207, %208, %192 : vector<16x1xi1>, vector<16x1xf32>
    %cst_66 = arith.constant dense<0xFF800000> : vector<1xf32>
    %210 = vector.multi_reduction <maximumf>, %209, %cst_66 [0] : vector<16x1xf32> to vector<1xf32>
    %211 = vector.shape_cast %210 : vector<1xf32> to vector<1x1xf32>
    %212 = vector.broadcast %211 : vector<1x1xf32> to vector<16x1xf32>
    %213 = arith.cmpf oeq, %209, %212 : vector<16x1xf32>
    %cst_67 = arith.constant 1.600000e+01 : f32
    %214 = vector.broadcast %cst_67 : f32 to vector<16x1xf32>
    %215 = arith.select %213, %3, %214 : vector<16x1xi1>, vector<16x1xf32>
    %cst_68 = arith.constant dense<0x7F800000> : vector<1xf32>
    %216 = vector.multi_reduction <minimumf>, %215, %cst_68 [0] : vector<16x1xf32> to vector<1xf32>
    %217 = vector.shape_cast %216 : vector<1xf32> to vector<1x1xf32>
    %218 = vector.broadcast %217 : vector<1x1xf32> to vector<16x1xf32>
    %219 = arith.cmpf oeq, %3, %218 : vector<16x1xf32>
    %220 = arith.extui %219 : vector<16x1xi1> to vector<16x1xi32>
    %221 = arith.sitofp %220 : vector<16x1xi32> to vector<16x1xf32>
    %222 = arith.addf %205, %221 : vector<16x1xf32>
    %cst_69 = arith.constant 0.000000e+00 : f32
    %223 = vector.broadcast %cst_69 : f32 to vector<16x1xf32>
    %224 = arith.cmpf ogt, %221, %223 : vector<16x1xf32>
    %cst_70 = arith.constant 0xFF800000 : f32
    %225 = vector.broadcast %cst_70 : f32 to vector<16x1xf32>
    %226 = arith.select %224, %225, %209 : vector<16x1xi1>, vector<16x1xf32>
    %cst_71 = arith.constant dense<0xFF800000> : vector<1xf32>
    %227 = vector.multi_reduction <maximumf>, %226, %cst_71 [0] : vector<16x1xf32> to vector<1xf32>
    %228 = vector.shape_cast %227 : vector<1xf32> to vector<1x1xf32>
    %229 = vector.broadcast %228 : vector<1x1xf32> to vector<16x1xf32>
    %230 = arith.cmpf oeq, %226, %229 : vector<16x1xf32>
    %cst_72 = arith.constant 1.600000e+01 : f32
    %231 = vector.broadcast %cst_72 : f32 to vector<16x1xf32>
    %232 = arith.select %230, %3, %231 : vector<16x1xi1>, vector<16x1xf32>
    %cst_73 = arith.constant dense<0x7F800000> : vector<1xf32>
    %233 = vector.multi_reduction <minimumf>, %232, %cst_73 [0] : vector<16x1xf32> to vector<1xf32>
    %234 = vector.shape_cast %233 : vector<1xf32> to vector<1x1xf32>
    %235 = vector.broadcast %234 : vector<1x1xf32> to vector<16x1xf32>
    %236 = arith.cmpf oeq, %3, %235 : vector<16x1xf32>
    %237 = arith.extui %236 : vector<16x1xi1> to vector<16x1xi32>
    %238 = arith.sitofp %237 : vector<16x1xi32> to vector<16x1xf32>
    %239 = arith.addf %222, %238 : vector<16x1xf32>
    %240 = arith.mulf %17, %239 : vector<16x1xf32>
    %241 = vector.broadcast %240 : vector<16x1xf32> to vector<16x32xf32>
    %242 = arith.mulf %0, %241 : vector<16x32xf32>
    %c0_74 = arith.constant 0 : index
    %c2 = arith.constant 2 : index
    %243 = vector.load %arg3[%c0_74, %c2] : memref<32x4xf32, #tpu.memory_space<vmem>>, vector<32x2xf32>
    %cst_75 = arith.constant dense<0.000000e+00> : vector<16x2xf32>
    %244 = tpu.matmul %242, %243, %cst_75 {dimension_numbers = #tpu.dot_dimension_numbers<[1], [0], [0], [1], [0, 0, 1, 1], [], []>} : vector<16x32xf32>, vector<32x2xf32>, vector<16x2xf32> -> vector<16x2xf32>
    %245 = vector.extract_strided_slice %244 {offsets = [0, 0], sizes = [16, 1], strides = [1, 1]} : vector<16x2xf32> to vector<16x1xf32>
    %246 = vector.extract_strided_slice %244 {offsets = [0, 1], sizes = [16, 1], strides = [1, 1]} : vector<16x2xf32> to vector<16x1xf32>
    %c2_76 = arith.constant 2 : index
    %247 = memref.load %arg0[%c2_76] : memref<4xf32, #tpu.memory_space<smem>>
    %c3 = arith.constant 3 : index
    %248 = memref.load %arg0[%c3] : memref<4xf32, #tpu.memory_space<smem>>
    %cst_77 = arith.constant dense<0.000000e+00> : vector<16x1xf32>
    %249 = tpu.matmul %1, %245, %cst_77 {dimension_numbers = #tpu.dot_dimension_numbers<[1], [0], [0], [1], [0, 0, 1, 1], [], []>} : vector<16x16xf32>, vector<16x1xf32>, vector<16x1xf32> -> vector<16x1xf32>
    %250 = arith.addf %249, %246 : vector<16x1xf32>
    %251 = vector.broadcast %247 : f32 to vector<16x1xf32>
    %252 = arith.addf %250, %251 : vector<16x1xf32>
    %253 = vector.broadcast %248 : f32 to vector<16x1xf32>
    %254 = arith.mulf %252, %253 : vector<16x1xf32>
    %255 = math.tanh %254 : vector<16x1xf32>
    %cst_78 = arith.constant 0.000000e+00 : f32
    %256 = vector.broadcast %cst_78 : f32 to vector<16x1xf32>
    %257 = arith.cmpf ogt, %239, %256 : vector<16x1xf32>
    %cst_79 = arith.constant 0xFF800000 : f32
    %258 = vector.broadcast %cst_79 : f32 to vector<16x1xf32>
    %259 = arith.select %257, %255, %258 : vector<16x1xi1>, vector<16x1xf32>
    %cst_80 = arith.constant 0.000000e+00 : f32
    %260 = vector.broadcast %cst_80 : f32 to vector<16x1xf32>
    %cst_81 = arith.constant dense<0xFF800000> : vector<1xf32>
    %261 = vector.multi_reduction <maximumf>, %259, %cst_81 [0] : vector<16x1xf32> to vector<1xf32>
    %262 = vector.shape_cast %261 : vector<1xf32> to vector<1x1xf32>
    %263 = vector.broadcast %262 : vector<1x1xf32> to vector<16x1xf32>
    %264 = arith.cmpf oeq, %259, %263 : vector<16x1xf32>
    %cst_82 = arith.constant 1.600000e+01 : f32
    %265 = vector.broadcast %cst_82 : f32 to vector<16x1xf32>
    %266 = arith.select %264, %3, %265 : vector<16x1xi1>, vector<16x1xf32>
    %cst_83 = arith.constant dense<0x7F800000> : vector<1xf32>
    %267 = vector.multi_reduction <minimumf>, %266, %cst_83 [0] : vector<16x1xf32> to vector<1xf32>
    %268 = vector.shape_cast %267 : vector<1xf32> to vector<1x1xf32>
    %269 = vector.broadcast %268 : vector<1x1xf32> to vector<16x1xf32>
    %270 = arith.cmpf oeq, %3, %269 : vector<16x1xf32>
    %271 = arith.extui %270 : vector<16x1xi1> to vector<16x1xi32>
    %272 = arith.sitofp %271 : vector<16x1xi32> to vector<16x1xf32>
    %273 = arith.addf %260, %272 : vector<16x1xf32>
    %cst_84 = arith.constant 0.000000e+00 : f32
    %274 = vector.broadcast %cst_84 : f32 to vector<16x1xf32>
    %275 = arith.cmpf ogt, %272, %274 : vector<16x1xf32>
    %cst_85 = arith.constant 0xFF800000 : f32
    %276 = vector.broadcast %cst_85 : f32 to vector<16x1xf32>
    %277 = arith.select %275, %276, %259 : vector<16x1xi1>, vector<16x1xf32>
    %cst_86 = arith.constant dense<0xFF800000> : vector<1xf32>
    %278 = vector.multi_reduction <maximumf>, %277, %cst_86 [0] : vector<16x1xf32> to vector<1xf32>
    %279 = vector.shape_cast %278 : vector<1xf32> to vector<1x1xf32>
    %280 = vector.broadcast %279 : vector<1x1xf32> to vector<16x1xf32>
    %281 = arith.cmpf oeq, %277, %280 : vector<16x1xf32>
    %cst_87 = arith.constant 1.600000e+01 : f32
    %282 = vector.broadcast %cst_87 : f32 to vector<16x1xf32>
    %283 = arith.select %281, %3, %282 : vector<16x1xi1>, vector<16x1xf32>
    %cst_88 = arith.constant dense<0x7F800000> : vector<1xf32>
    %284 = vector.multi_reduction <minimumf>, %283, %cst_88 [0] : vector<16x1xf32> to vector<1xf32>
    %285 = vector.shape_cast %284 : vector<1xf32> to vector<1x1xf32>
    %286 = vector.broadcast %285 : vector<1x1xf32> to vector<16x1xf32>
    %287 = arith.cmpf oeq, %3, %286 : vector<16x1xf32>
    %288 = arith.extui %287 : vector<16x1xi1> to vector<16x1xi32>
    %289 = arith.sitofp %288 : vector<16x1xi32> to vector<16x1xf32>
    %290 = arith.addf %273, %289 : vector<16x1xf32>
    %cst_89 = arith.constant 0.000000e+00 : f32
    %291 = vector.broadcast %cst_89 : f32 to vector<16x1xf32>
    %292 = arith.cmpf ogt, %289, %291 : vector<16x1xf32>
    %cst_90 = arith.constant 0xFF800000 : f32
    %293 = vector.broadcast %cst_90 : f32 to vector<16x1xf32>
    %294 = arith.select %292, %293, %277 : vector<16x1xi1>, vector<16x1xf32>
    %cst_91 = arith.constant dense<0xFF800000> : vector<1xf32>
    %295 = vector.multi_reduction <maximumf>, %294, %cst_91 [0] : vector<16x1xf32> to vector<1xf32>
    %296 = vector.shape_cast %295 : vector<1xf32> to vector<1x1xf32>
    %297 = vector.broadcast %296 : vector<1x1xf32> to vector<16x1xf32>
    %298 = arith.cmpf oeq, %294, %297 : vector<16x1xf32>
    %cst_92 = arith.constant 1.600000e+01 : f32
    %299 = vector.broadcast %cst_92 : f32 to vector<16x1xf32>
    %300 = arith.select %298, %3, %299 : vector<16x1xi1>, vector<16x1xf32>
    %cst_93 = arith.constant dense<0x7F800000> : vector<1xf32>
    %301 = vector.multi_reduction <minimumf>, %300, %cst_93 [0] : vector<16x1xf32> to vector<1xf32>
    %302 = vector.shape_cast %301 : vector<1xf32> to vector<1x1xf32>
    %303 = vector.broadcast %302 : vector<1x1xf32> to vector<16x1xf32>
    %304 = arith.cmpf oeq, %3, %303 : vector<16x1xf32>
    %305 = arith.extui %304 : vector<16x1xi1> to vector<16x1xi32>
    %306 = arith.sitofp %305 : vector<16x1xi32> to vector<16x1xf32>
    %307 = arith.addf %290, %306 : vector<16x1xf32>
    %cst_94 = arith.constant 0.000000e+00 : f32
    %308 = vector.broadcast %cst_94 : f32 to vector<16x1xf32>
    %309 = arith.cmpf ogt, %306, %308 : vector<16x1xf32>
    %cst_95 = arith.constant 0xFF800000 : f32
    %310 = vector.broadcast %cst_95 : f32 to vector<16x1xf32>
    %311 = arith.select %309, %310, %294 : vector<16x1xi1>, vector<16x1xf32>
    %cst_96 = arith.constant dense<0xFF800000> : vector<1xf32>
    %312 = vector.multi_reduction <maximumf>, %311, %cst_96 [0] : vector<16x1xf32> to vector<1xf32>
    %313 = vector.shape_cast %312 : vector<1xf32> to vector<1x1xf32>
    %314 = vector.broadcast %313 : vector<1x1xf32> to vector<16x1xf32>
    %315 = arith.cmpf oeq, %311, %314 : vector<16x1xf32>
    %cst_97 = arith.constant 1.600000e+01 : f32
    %316 = vector.broadcast %cst_97 : f32 to vector<16x1xf32>
    %317 = arith.select %315, %3, %316 : vector<16x1xi1>, vector<16x1xf32>
    %cst_98 = arith.constant dense<0x7F800000> : vector<1xf32>
    %318 = vector.multi_reduction <minimumf>, %317, %cst_98 [0] : vector<16x1xf32> to vector<1xf32>
    %319 = vector.shape_cast %318 : vector<1xf32> to vector<1x1xf32>
    %320 = vector.broadcast %319 : vector<1x1xf32> to vector<16x1xf32>
    %321 = arith.cmpf oeq, %3, %320 : vector<16x1xf32>
    %322 = arith.extui %321 : vector<16x1xi1> to vector<16x1xi32>
    %323 = arith.sitofp %322 : vector<16x1xi32> to vector<16x1xf32>
    %324 = arith.addf %307, %323 : vector<16x1xf32>
    %cst_99 = arith.constant 0.000000e+00 : f32
    %325 = vector.broadcast %cst_99 : f32 to vector<16x1xf32>
    %326 = arith.cmpf ogt, %323, %325 : vector<16x1xf32>
    %cst_100 = arith.constant 0xFF800000 : f32
    %327 = vector.broadcast %cst_100 : f32 to vector<16x1xf32>
    %328 = arith.select %326, %327, %311 : vector<16x1xi1>, vector<16x1xf32>
    %cst_101 = arith.constant dense<0xFF800000> : vector<1xf32>
    %329 = vector.multi_reduction <maximumf>, %328, %cst_101 [0] : vector<16x1xf32> to vector<1xf32>
    %330 = vector.shape_cast %329 : vector<1xf32> to vector<1x1xf32>
    %331 = vector.broadcast %330 : vector<1x1xf32> to vector<16x1xf32>
    %332 = arith.cmpf oeq, %328, %331 : vector<16x1xf32>
    %cst_102 = arith.constant 1.600000e+01 : f32
    %333 = vector.broadcast %cst_102 : f32 to vector<16x1xf32>
    %334 = arith.select %332, %3, %333 : vector<16x1xi1>, vector<16x1xf32>
    %cst_103 = arith.constant dense<0x7F800000> : vector<1xf32>
    %335 = vector.multi_reduction <minimumf>, %334, %cst_103 [0] : vector<16x1xf32> to vector<1xf32>
    %336 = vector.shape_cast %335 : vector<1xf32> to vector<1x1xf32>
    %337 = vector.broadcast %336 : vector<1x1xf32> to vector<16x1xf32>
    %338 = arith.cmpf oeq, %3, %337 : vector<16x1xf32>
    %339 = arith.extui %338 : vector<16x1xi1> to vector<16x1xi32>
    %340 = arith.sitofp %339 : vector<16x1xi32> to vector<16x1xf32>
    %341 = arith.addf %324, %340 : vector<16x1xf32>
    %cst_104 = arith.constant 0.000000e+00 : f32
    %342 = vector.broadcast %cst_104 : f32 to vector<16x1xf32>
    %343 = arith.cmpf ogt, %340, %342 : vector<16x1xf32>
    %cst_105 = arith.constant 0xFF800000 : f32
    %344 = vector.broadcast %cst_105 : f32 to vector<16x1xf32>
    %345 = arith.select %343, %344, %328 : vector<16x1xi1>, vector<16x1xf32>
    %cst_106 = arith.constant dense<0xFF800000> : vector<1xf32>
    %346 = vector.multi_reduction <maximumf>, %345, %cst_106 [0] : vector<16x1xf32> to vector<1xf32>
    %347 = vector.shape_cast %346 : vector<1xf32> to vector<1x1xf32>
    %348 = vector.broadcast %347 : vector<1x1xf32> to vector<16x1xf32>
    %349 = arith.cmpf oeq, %345, %348 : vector<16x1xf32>
    %cst_107 = arith.constant 1.600000e+01 : f32
    %350 = vector.broadcast %cst_107 : f32 to vector<16x1xf32>
    %351 = arith.select %349, %3, %350 : vector<16x1xi1>, vector<16x1xf32>
    %cst_108 = arith.constant dense<0x7F800000> : vector<1xf32>
    %352 = vector.multi_reduction <minimumf>, %351, %cst_108 [0] : vector<16x1xf32> to vector<1xf32>
    %353 = vector.shape_cast %352 : vector<1xf32> to vector<1x1xf32>
    %354 = vector.broadcast %353 : vector<1x1xf32> to vector<16x1xf32>
    %355 = arith.cmpf oeq, %3, %354 : vector<16x1xf32>
    %356 = arith.extui %355 : vector<16x1xi1> to vector<16x1xi32>
    %357 = arith.sitofp %356 : vector<16x1xi32> to vector<16x1xf32>
    %358 = arith.addf %341, %357 : vector<16x1xf32>
    %cst_109 = arith.constant 0.000000e+00 : f32
    %359 = vector.broadcast %cst_109 : f32 to vector<16x1xf32>
    %360 = arith.cmpf ogt, %357, %359 : vector<16x1xf32>
    %cst_110 = arith.constant 0xFF800000 : f32
    %361 = vector.broadcast %cst_110 : f32 to vector<16x1xf32>
    %362 = arith.select %360, %361, %345 : vector<16x1xi1>, vector<16x1xf32>
    %cst_111 = arith.constant dense<0xFF800000> : vector<1xf32>
    %363 = vector.multi_reduction <maximumf>, %362, %cst_111 [0] : vector<16x1xf32> to vector<1xf32>
    %364 = vector.shape_cast %363 : vector<1xf32> to vector<1x1xf32>
    %365 = vector.broadcast %364 : vector<1x1xf32> to vector<16x1xf32>
    %366 = arith.cmpf oeq, %362, %365 : vector<16x1xf32>
    %cst_112 = arith.constant 1.600000e+01 : f32
    %367 = vector.broadcast %cst_112 : f32 to vector<16x1xf32>
    %368 = arith.select %366, %3, %367 : vector<16x1xi1>, vector<16x1xf32>
    %cst_113 = arith.constant dense<0x7F800000> : vector<1xf32>
    %369 = vector.multi_reduction <minimumf>, %368, %cst_113 [0] : vector<16x1xf32> to vector<1xf32>
    %370 = vector.shape_cast %369 : vector<1xf32> to vector<1x1xf32>
    %371 = vector.broadcast %370 : vector<1x1xf32> to vector<16x1xf32>
    %372 = arith.cmpf oeq, %3, %371 : vector<16x1xf32>
    %373 = arith.extui %372 : vector<16x1xi1> to vector<16x1xi32>
    %374 = arith.sitofp %373 : vector<16x1xi32> to vector<16x1xf32>
    %375 = arith.addf %358, %374 : vector<16x1xf32>
    %cst_114 = arith.constant 0.000000e+00 : f32
    %376 = vector.broadcast %cst_114 : f32 to vector<16x1xf32>
    %377 = arith.cmpf ogt, %374, %376 : vector<16x1xf32>
    %cst_115 = arith.constant 0xFF800000 : f32
    %378 = vector.broadcast %cst_115 : f32 to vector<16x1xf32>
    %379 = arith.select %377, %378, %362 : vector<16x1xi1>, vector<16x1xf32>
    %cst_116 = arith.constant dense<0xFF800000> : vector<1xf32>
    %380 = vector.multi_reduction <maximumf>, %379, %cst_116 [0] : vector<16x1xf32> to vector<1xf32>
    %381 = vector.shape_cast %380 : vector<1xf32> to vector<1x1xf32>
    %382 = vector.broadcast %381 : vector<1x1xf32> to vector<16x1xf32>
    %383 = arith.cmpf oeq, %379, %382 : vector<16x1xf32>
    %cst_117 = arith.constant 1.600000e+01 : f32
    %384 = vector.broadcast %cst_117 : f32 to vector<16x1xf32>
    %385 = arith.select %383, %3, %384 : vector<16x1xi1>, vector<16x1xf32>
    %cst_118 = arith.constant dense<0x7F800000> : vector<1xf32>
    %386 = vector.multi_reduction <minimumf>, %385, %cst_118 [0] : vector<16x1xf32> to vector<1xf32>
    %387 = vector.shape_cast %386 : vector<1xf32> to vector<1x1xf32>
    %388 = vector.broadcast %387 : vector<1x1xf32> to vector<16x1xf32>
    %389 = arith.cmpf oeq, %3, %388 : vector<16x1xf32>
    %390 = arith.extui %389 : vector<16x1xi1> to vector<16x1xi32>
    %391 = arith.sitofp %390 : vector<16x1xi32> to vector<16x1xf32>
    %392 = arith.addf %375, %391 : vector<16x1xf32>
    %cst_119 = arith.constant 0.000000e+00 : f32
    %393 = vector.broadcast %cst_119 : f32 to vector<16x1xf32>
    %394 = arith.cmpf ogt, %391, %393 : vector<16x1xf32>
    %cst_120 = arith.constant 0xFF800000 : f32
    %395 = vector.broadcast %cst_120 : f32 to vector<16x1xf32>
    %396 = arith.select %394, %395, %379 : vector<16x1xi1>, vector<16x1xf32>
    %cst_121 = arith.constant dense<0xFF800000> : vector<1xf32>
    %397 = vector.multi_reduction <maximumf>, %396, %cst_121 [0] : vector<16x1xf32> to vector<1xf32>
    %398 = vector.shape_cast %397 : vector<1xf32> to vector<1x1xf32>
    %399 = vector.broadcast %398 : vector<1x1xf32> to vector<16x1xf32>
    %400 = arith.cmpf oeq, %396, %399 : vector<16x1xf32>
    %cst_122 = arith.constant 1.600000e+01 : f32
    %401 = vector.broadcast %cst_122 : f32 to vector<16x1xf32>
    %402 = arith.select %400, %3, %401 : vector<16x1xi1>, vector<16x1xf32>
    %cst_123 = arith.constant dense<0x7F800000> : vector<1xf32>
    %403 = vector.multi_reduction <minimumf>, %402, %cst_123 [0] : vector<16x1xf32> to vector<1xf32>
    %404 = vector.shape_cast %403 : vector<1xf32> to vector<1x1xf32>
    %405 = vector.broadcast %404 : vector<1x1xf32> to vector<16x1xf32>
    %406 = arith.cmpf oeq, %3, %405 : vector<16x1xf32>
    %407 = arith.extui %406 : vector<16x1xi1> to vector<16x1xi32>
    %408 = arith.sitofp %407 : vector<16x1xi32> to vector<16x1xf32>
    %409 = arith.addf %392, %408 : vector<16x1xf32>
    %cst_124 = arith.constant 0.000000e+00 : f32
    %410 = vector.broadcast %cst_124 : f32 to vector<16x1xf32>
    %411 = arith.cmpf ogt, %408, %410 : vector<16x1xf32>
    %cst_125 = arith.constant 0xFF800000 : f32
    %412 = vector.broadcast %cst_125 : f32 to vector<16x1xf32>
    %413 = arith.select %411, %412, %396 : vector<16x1xi1>, vector<16x1xf32>
    %cst_126 = arith.constant dense<0xFF800000> : vector<1xf32>
    %414 = vector.multi_reduction <maximumf>, %413, %cst_126 [0] : vector<16x1xf32> to vector<1xf32>
    %415 = vector.shape_cast %414 : vector<1xf32> to vector<1x1xf32>
    %416 = vector.broadcast %415 : vector<1x1xf32> to vector<16x1xf32>
    %417 = arith.cmpf oeq, %413, %416 : vector<16x1xf32>
    %cst_127 = arith.constant 1.600000e+01 : f32
    %418 = vector.broadcast %cst_127 : f32 to vector<16x1xf32>
    %419 = arith.select %417, %3, %418 : vector<16x1xi1>, vector<16x1xf32>
    %cst_128 = arith.constant dense<0x7F800000> : vector<1xf32>
    %420 = vector.multi_reduction <minimumf>, %419, %cst_128 [0] : vector<16x1xf32> to vector<1xf32>
    %421 = vector.shape_cast %420 : vector<1xf32> to vector<1x1xf32>
    %422 = vector.broadcast %421 : vector<1x1xf32> to vector<16x1xf32>
    %423 = arith.cmpf oeq, %3, %422 : vector<16x1xf32>
    %424 = arith.extui %423 : vector<16x1xi1> to vector<16x1xi32>
    %425 = arith.sitofp %424 : vector<16x1xi32> to vector<16x1xf32>
    %426 = arith.addf %409, %425 : vector<16x1xf32>
    %cst_129 = arith.constant 0.000000e+00 : f32
    %427 = vector.broadcast %cst_129 : f32 to vector<16x1xf32>
    %428 = arith.cmpf ogt, %425, %427 : vector<16x1xf32>
    %cst_130 = arith.constant 0xFF800000 : f32
    %429 = vector.broadcast %cst_130 : f32 to vector<16x1xf32>
    %430 = arith.select %428, %429, %413 : vector<16x1xi1>, vector<16x1xf32>
    %cst_131 = arith.constant dense<0xFF800000> : vector<1xf32>
    %431 = vector.multi_reduction <maximumf>, %430, %cst_131 [0] : vector<16x1xf32> to vector<1xf32>
    %432 = vector.shape_cast %431 : vector<1xf32> to vector<1x1xf32>
    %433 = vector.broadcast %432 : vector<1x1xf32> to vector<16x1xf32>
    %434 = arith.cmpf oeq, %430, %433 : vector<16x1xf32>
    %cst_132 = arith.constant 1.600000e+01 : f32
    %435 = vector.broadcast %cst_132 : f32 to vector<16x1xf32>
    %436 = arith.select %434, %3, %435 : vector<16x1xi1>, vector<16x1xf32>
    %cst_133 = arith.constant dense<0x7F800000> : vector<1xf32>
    %437 = vector.multi_reduction <minimumf>, %436, %cst_133 [0] : vector<16x1xf32> to vector<1xf32>
    %438 = vector.shape_cast %437 : vector<1xf32> to vector<1x1xf32>
    %439 = vector.broadcast %438 : vector<1x1xf32> to vector<16x1xf32>
    %440 = arith.cmpf oeq, %3, %439 : vector<16x1xf32>
    %441 = arith.extui %440 : vector<16x1xi1> to vector<16x1xi32>
    %442 = arith.sitofp %441 : vector<16x1xi32> to vector<16x1xf32>
    %443 = arith.addf %426, %442 : vector<16x1xf32>
    %444 = arith.mulf %255, %443 : vector<16x1xf32>
    %445 = vector.broadcast %444 : vector<16x1xf32> to vector<16x32xf32>
    %446 = arith.mulf %242, %445 : vector<16x32xf32>
    %cst_134 = arith.constant dense<0.000000e+00> : vector<32xf32>
    %447 = vector.multi_reduction <add>, %446, %cst_134 [0] : vector<16x32xf32> to vector<32xf32>
    %448 = vector.shape_cast %447 : vector<32xf32> to vector<1x32xf32>
    %cst_135 = arith.constant 0.0909090936 : f32
    %449 = vector.broadcast %cst_135 : f32 to vector<1x32xf32>
    %450 = arith.mulf %448, %449 : vector<1x32xf32>
    %cst_136 = arith.constant 0.000000e+00 : f32
    %451 = vector.broadcast %cst_136 : f32 to vector<16x1xf32>
    %452 = arith.cmpf ogt, %443, %451 : vector<16x1xf32>
    %cst_137 = arith.constant 0xFF800000 : f32
    %453 = vector.shape_cast %452 : vector<16x1xi1> to vector<16x1xi1>
    %454 = vector.broadcast %453 : vector<16x1xi1> to vector<16x32xi1>
    %455 = vector.broadcast %cst_137 : f32 to vector<16x32xf32>
    %456 = arith.select %454, %446, %455 : vector<16x32xi1>, vector<16x32xf32>
    %cst_138 = arith.constant dense<0xFF800000> : vector<32xf32>
    %457 = vector.multi_reduction <maximumf>, %456, %cst_138 [0] : vector<16x32xf32> to vector<32xf32>
    %458 = vector.shape_cast %457 : vector<32xf32> to vector<1x32xf32>
    %c0_139 = arith.constant 0 : index
    %c0_140 = arith.constant 0 : index
    %459 = vector.load %arg4[%c0_139, %c0_140] : memref<64x8xf32, #tpu.memory_space<vmem>>, vector<32x8xf32>
    %cst_141 = arith.constant dense<0.000000e+00> : vector<1x8xf32>
    %460 = tpu.matmul %450, %459, %cst_141 {dimension_numbers = #tpu.dot_dimension_numbers<[1], [0], [0], [1], [0, 0, 1, 1], [], []>} : vector<1x32xf32>, vector<32x8xf32>, vector<1x8xf32> -> vector<1x8xf32>
    %c32 = arith.constant 32 : index
    %c0_142 = arith.constant 0 : index
    %461 = vector.load %arg4[%c32, %c0_142] : memref<64x8xf32, #tpu.memory_space<vmem>>, vector<32x8xf32>
    %cst_143 = arith.constant dense<0.000000e+00> : vector<1x8xf32>
    %462 = tpu.matmul %458, %461, %cst_143 {dimension_numbers = #tpu.dot_dimension_numbers<[1], [0], [0], [1], [0, 0, 1, 1], [], []>} : vector<1x32xf32>, vector<32x8xf32>, vector<1x8xf32> -> vector<1x8xf32>
    %463 = arith.addf %460, %462 : vector<1x8xf32>
    %c0_144 = arith.constant 0 : index
    %c0_145 = arith.constant 0 : index
    %464 = vector.load %arg5[%c0_144, %c0_145] : memref<1x8xf32, #tpu.memory_space<vmem>>, vector<1x8xf32>
    %465 = arith.addf %463, %464 : vector<1x8xf32>
    %c0_146 = arith.constant 0 : index
    %c0_147 = arith.constant 0 : index
    %466 = vector.load %arg6[%c0_146, %c0_147] : memref<1x8xf32, #tpu.memory_space<vmem>>, vector<1x8xf32>
    tpu.vector_store %arg6[%c0_146, %c0_147], %465 {strides = array<i32>} : memref<1x8xf32, #tpu.memory_space<vmem>>, vector<1x8xf32>,
    return
  }
}

</mosaic_0001>

<llo_original>
// kernel: tpu_custom_call.1
$region0: #{tpu_custom_call.1}
  #allocation0 [shape = 'u32[]', space=smem, size = 0x4, offset = 0x4, fixed_abs, tag = 'smem constant byte address 0x4 - core index']
  #allocation1 [shape = 'u32[144,128]{1,0:T(1,128)}', space=vmem, size = 0x12000, scoped, tag = 'internal scratch']
  %s0 = inlined_call_operand.vmem [shape: f32[4], index: 0, kind: input, shape index: {}]
  %s1 = inlined_call_operand.vmem [shape: f32[16,32], index: 1, kind: input, shape index: {}]
  %s2 = inlined_call_operand.vmem [shape: f32[16,16], index: 2, kind: input, shape index: {}]
  %s3 = inlined_call_operand.vmem [shape: f32[32,4], index: 3, kind: input, shape index: {}]
  %s4 = inlined_call_operand.vmem [shape: f32[64,8], index: 4, kind: input, shape index: {}]
  %s5 = inlined_call_operand.vmem [shape: f32[1,8], index: 5, kind: input, shape index: {}]
  %s6 = inlined_call_operand.hbm [shape: f32[1,8], index: 6, kind: output, shape index: {}]
  %s7 = sld [smem:[#allocation0]]
  $region38: #{tpu_custom_call.1} parent=0
    _
  %s9 = ssub.s32 1, %s7
  %s10 = scalar_select 0, %s9, %s7
  $region1: #{tpu_custom_call.1} parent=0
    #allocation2 [shape = 'u8[512]{0}', space=smem, size = 0x200, scoped, tag = 'input window, operand 0, single buffered']
    #allocation3 [shape = 's32[1]{0}', space=sflag, size = 0x4, scoped, tag = 'scoped memory for tpu_custom_call.1']
    #allocation4 [shape = 's32[1]{0}', space=sflag, size = 0x4, scoped, tag = 'scoped memory for tpu_custom_call.1']
    #allocation5 [shape = 'u8[512]{0}', space=vmem, size = 0x400, scoped, tag = 'output window, operand 0, single buffered']
    %11 = vsyncpa [#allocation4], 0
    %12 = vsyncpa [#allocation3], 0
    // Predicated region
    $region2: #{tpu_custom_call.1} parent=1 // pred_check
      _
    $region3: #{tpu_custom_call.1} parent=1 // pred_check_branch
      %14 = sbr.rel (0) target = $region5
    $region4: #{tpu_custom_call.1} parent=1 // pred_region
      %s16 = ssub.s32 16, 16
      %17 = vsyncadd [#allocation4], %s16
      %s19 = sshll.u32 %s0, 4
      %s20 = int_to_ptr.vmem [resolvable:$true] %s19
      %22 = dma.vmem_to_smem %s20, 16, [#allocation2], [#allocation4]
    $region5: #{tpu_custom_call.1} parent=1 // pred_fallthru
      _
    // Predicated region
    $region6: #{tpu_custom_call.1} parent=1 // pred_check
      _
    $region7: #{tpu_custom_call.1} parent=1 // pred_check_branch
      %24 = sbr.rel (0) target = $region9
    $region8: #{tpu_custom_call.1} parent=1 // pred_region
      _
    $region9: #{tpu_custom_call.1} parent=1 // pred_fallthru
      _
    // Predicated region
    $region10: #{tpu_custom_call.1} parent=1 // pred_check
      _
    $region11: #{tpu_custom_call.1} parent=1 // pred_check_branch
      %26 = sbr.rel (0) target = $region13
    $region12: #{tpu_custom_call.1} parent=1 // pred_region
      _
    $region13: #{tpu_custom_call.1} parent=1 // pred_fallthru
      _
    // Predicated region
    $region14: #{tpu_custom_call.1} parent=1 // pred_check
      _
    $region15: #{tpu_custom_call.1} parent=1 // pred_check_branch
      %28 = sbr.rel (0) target = $region17
    $region16: #{tpu_custom_call.1} parent=1 // pred_region
      _
    $region17: #{tpu_custom_call.1} parent=1 // pred_fallthru
      _
    // Predicated region
    $region18: #{tpu_custom_call.1} parent=1 // pred_check
      _
    $region19: #{tpu_custom_call.1} parent=1 // pred_check_branch
      %30 = sbr.rel (0) target = $region21
    $region20: #{tpu_custom_call.1} parent=1 // pred_region
      _
    $region21: #{tpu_custom_call.1} parent=1 // pred_fallthru
      _
    // Predicated region
    $region22: #{tpu_custom_call.1} parent=1 // pred_check
      _
    $region23: #{tpu_custom_call.1} parent=1 // pred_check_branch
      %32 = sbr.rel (0) target = $region25
    $region24: #{tpu_custom_call.1} parent=1 // pred_region
      _
    $region25: #{tpu_custom_call.1} parent=1 // pred_fallthru
      _
    // Predicated region
    $region26: #{tpu_custom_call.1} parent=1 // pred_check
      _
    $region27: #{tpu_custom_call.1} parent=1 // pred_check_branch
      %34 = sbr.rel (0) target = $region29
    $region28: #{tpu_custom_call.1} parent=1 // pred_region
      %35 = dma.done [#allocation4], 16
    $region29: #{tpu_custom_call.1} parent=1 // pred_fallthru
      _
    %36 = sfence
    %v37 = vld [vmem:[%s1] sm:$0xff]
    %v38 = vld [vmem:[%s1 + $0x8] sm:$0xff]
    %v39 = vld [vmem:[%s2] sm:$0xff]
    %v40 = vld [vmem:[%s2 + $0x8] sm:$0xff]
    %v41 = vlaneseq
    %v42 = vshrl.u32 %v41, 7
    %v43 = vadd.s32 %v42, 8
    %v44 = vcvt.s32.f32 %v42
    %v45 = vcvt.s32.f32 %v43
    %v46 = vld [vmem:[%s3] sm:$0xff]
    %v47 = vld [vmem:[%s3 + $0x8] sm:$0xff]
    %v48 = vld [vmem:[%s3 + $0x10] sm:$0xff]
    %v49 = vld [vmem:[%s3 + $0x18] sm:$0xff]
    %vm50 = vcmask 261120
    %v52 = vsel %vm50, %v37, 0
    %v55 = vsel %vm50, %v38, 0
    %57 = vmatprep.subr.mxu0 0.0
    %58 = vmatpush1.msra.mxu0 0.0
    %59 = vmatprep.subr.mxu0 0.0
    %60 = vmatpush1.msra.mxu0 0.0
    %61 = vmatprep.subr.mxu0 0.0
    %62 = vmatpush1.msra.mxu0 0.0
    %63 = vmatprep.subr.mxu0 0.0
    %64 = vmatpush1.msra.mxu0 0.0
    %65 = vmatprep.subr.mxu0 0.0
    %66 = vmatpush1.msra.mxu0 0.0
    %67 = vmatprep.subr.mxu0 0.0
    %68 = vmatpush1.msra.mxu0 0.0
    %69 = vmatprep.subr.mxu0 0.0
    %70 = vmatpush1.msra.mxu0 0.0
    %71 = vmatprep.subr.mxu0 0.0
    %72 = vmatpush1.msra.mxu0 0.0
    %73 = vmatprep.subr.mxu0 0.0
    %74 = vmatpush1.msra.mxu0 0.0
    %75 = vmatprep.subr.mxu0 0.0
    %76 = vmatpush1.msra.mxu0 0.0
    %77 = vmatprep.subr.mxu0 0.0
    %78 = vmatpush1.msra.mxu0 0.0
    %79 = vmatprep.subr.mxu0 0.0
    %80 = vmatpush1.msra.mxu0 0.0
    %81 = vmatprep.subr.mxu0 0.0
    %82 = vmatpush1.msra.mxu0 %v49
    %83 = vmatprep.subr.mxu0 0.0
    %84 = vmatpush1.msra.mxu0 %v48
    %85 = vmatprep.subr.mxu0 0.0
    %86 = vmatpush1.msra.mxu0 %v47
    %87 = vmatprep.subr.mxu0 0.0
    %88 = vmatpush1.msra.mxu0 %v46
    %89 = vmatprep.subr.mxu0 0.0
    %90 = vmatpush2.msra.mxu0 0.0
    %91 = vmatprep.subr.mxu0 0.0
    %92 = vmatpush2.msra.mxu0 0.0
    %93 = vmatprep.subr.mxu0 0.0
    %94 = vmatpush2.msra.mxu0 0.0
    %95 = vmatprep.subr.mxu0 0.0
    %96 = vmatpush2.msra.mxu0 0.0
    %97 = vmatprep.subr.mxu0 0.0
    %98 = vmatpush2.msra.mxu0 0.0
    %99 = vmatprep.subr.mxu0 0.0
    %100 = vmatpush2.msra.mxu0 0.0
    %101 = vmatprep.subr.mxu0 0.0
    %102 = vmatpush2.msra.mxu0 0.0
    %103 = vmatprep.subr.mxu0 0.0
    %104 = vmatpush2.msra.mxu0 0.0
    %105 = vmatprep.subr.mxu0 0.0
    %106 = vmatpush2.msra.mxu0 0.0
    %107 = vmatprep.subr.mxu0 0.0
    %108 = vmatpush2.msra.mxu0 0.0
    %109 = vmatprep.subr.mxu0 0.0
    %110 = vmatpush2.msra.mxu0 0.0
    %111 = vmatprep.subr.mxu0 0.0
    %112 = vmatpush2.msra.mxu0 0.0
    %113 = vmatprep.subr.mxu0 0.0
    %114 = vmatpush2.msra.mxu0 0.0
    %115 = vmatprep.subr.mxu0 0.0
    %116 = vmatpush2.msra.mxu0 0.0
    %117 = vmatprep.subr.mxu0 0.0
    %118 = vmatpush2.msra.mxu0 0.0
    %119 = vmatprep.subr.mxu0 0.0
    %120 = vmatpush2.msra.mxu0 0.0
    %121 = vmatprep.mubr.f32.mxu0 0.0
    %122 = vmatmul.mubr.f32.gmra.mxu0 %v52
    %v123 = vpop.f32.mrf.mxu0
    %v124 = vadd.f32 0.0, %v123
    %v125 = vpop.f32.mrf.mxu0
    %126 = vmatprep.mubr.f32.mxu0 0.0
    %127 = vmatmul.mubr.f32.gmra.mxu0 %v55
    %v128 = vpop.f32.mrf.mxu0
    %v129 = vadd.f32 0.0, %v128
    %v130 = vpop.f32.mrf.mxu0
    %131 = vdwg.mxu0
    %s132 = sld [smem:[#allocation2]]
    %s133 = sld [smem:[#allocation2 + $0x1]]
    %136 = vrot.lane.b32.xlu0 %v124, 127
    %v137 = vpop.permute.xlu0 %136
    %138 = vrot.lane.b32.xlu0 %v129, 127
    %v139 = vpop.permute.xlu0 %138
    %vm142 = vcmask 130048
    %v144 = vsel %vm142, %v39, 0
    %v147 = vsel %vm142, %v40, 0
    %149 = vmatprep.subr.mxu0 0.0
    %150 = vmatpush1.msra.mxu0 0.0
    %151 = vmatprep.subr.mxu0 0.0
    %152 = vmatpush1.msra.mxu0 0.0
    %153 = vmatprep.subr.mxu0 0.0
    %154 = vmatpush1.msra.mxu0 0.0
    %155 = vmatprep.subr.mxu0 0.0
    %156 = vmatpush1.msra.mxu0 0.0
    %157 = vmatprep.subr.mxu0 0.0
    %158 = vmatpush1.msra.mxu0 0.0
    %159 = vmatprep.subr.mxu0 0.0
    %160 = vmatpush1.msra.mxu0 0.0
    %161 = vmatprep.subr.mxu0 0.0
    %162 = vmatpush1.msra.mxu0 0.0
    %163 = vmatprep.subr.mxu0 0.0
    %164 = vmatpush1.msra.mxu0 0.0
    %165 = vmatprep.subr.mxu0 0.0
    %166 = vmatpush1.msra.mxu0 0.0
    %167 = vmatprep.subr.mxu0 0.0
    %168 = vmatpush1.msra.mxu0 0.0
    %169 = vmatprep.subr.mxu0 0.0
    %170 = vmatpush1.msra.mxu0 0.0
    %171 = vmatprep.subr.mxu0 0.0
    %172 = vmatpush1.msra.mxu0 0.0
    %173 = vmatprep.subr.mxu0 0.0
    %174 = vmatpush1.msra.mxu0 0.0
    %175 = vmatprep.subr.mxu0 0.0
    %176 = vmatpush1.msra.mxu0 0.0
    %177 = vmatprep.subr.mxu0 0.0
    %178 = vmatpush1.msra.mxu0 %v129
    %179 = vmatprep.subr.mxu0 0.0
    %180 = vmatpush1.msra.mxu0 %v124
    %181 = vmatprep.subr.mxu0 0.0
    %182 = vmatpush2.msra.mxu0 0.0
    %183 = vmatprep.subr.mxu0 0.0
    %184 = vmatpush2.msra.mxu0 0.0
    %185 = vmatprep.subr.mxu0 0.0
    %186 = vmatpush2.msra.mxu0 0.0
    %187 = vmatprep.subr.mxu0 0.0
    %188 = vmatpush2.msra.mxu0 0.0
    %189 = vmatprep.subr.mxu0 0.0
    %190 = vmatpush2.msra.mxu0 0.0
    %191 = vmatprep.subr.mxu0 0.0
    %192 = vmatpush2.msra.mxu0 0.0
    %193 = vmatprep.subr.mxu0 0.0
    %194 = vmatpush2.msra.mxu0 0.0
    %195 = vmatprep.subr.mxu0 0.0
    %196 = vmatpush2.msra.mxu0 0.0
    %197 = vmatprep.subr.mxu0 0.0
    %198 = vmatpush2.msra.mxu0 0.0
    %199 = vmatprep.subr.mxu0 0.0
    %200 = vmatpush2.msra.mxu0 0.0
    %201 = vmatprep.subr.mxu0 0.0
    %202 = vmatpush2.msra.mxu0 0.0
    %203 = vmatprep.subr.mxu0 0.0
    %204 = vmatpush2.msra.mxu0 0.0
    %205 = vmatprep.subr.mxu0 0.0
    %206 = vmatpush2.msra.mxu0 0.0
    %207 = vmatprep.subr.mxu0 0.0
    %208 = vmatpush2.msra.mxu0 0.0
    %209 = vmatprep.subr.mxu0 0.0
    %210 = vmatpush2.msra.mxu0 0.0
    %211 = vmatprep.subr.mxu0 0.0
    %212 = vmatpush2.msra.mxu0 0.0
    %213 = vmatprep.mubr.f32.mxu0 0.0
    %214 = vmatmul.mubr.f32.gmra.mxu0 %v144
    %v215 = vpop.f32.mrf.mxu0
    %v216 = vadd.f32 %v137, %v215
    %v217 = vpop.f32.mrf.mxu0
    %218 = vmatprep.mubr.f32.mxu0 0.0
    %219 = vmatmul.mubr.f32.gmra.mxu0 %v147
    %v220 = vpop.f32.mrf.mxu0
    %v221 = vadd.f32 %v139, %v220
    %v222 = vpop.f32.mrf.mxu0
    %223 = vdwg.mxu0
    %v224 = vstv %s132
    %v225 = vadd.f32 %v216, %v224
    %v226 = vadd.f32 %v221, %v224
    %v227 = vstv %s133
    %v228 = vmul.f32 %v225, %v227
    %v229 = vmul.f32 %v226, %v227
    %v230 = vtanh.pop %v228
    %v231 = vtanh.pop %v229
    %vm232 = vcmp.gt.f32.partialorder 1.0, 0.0
    %v233 = vsel %vm232, %v230, -inf
    %v234 = vsel %vm232, %v231, -inf
    %vm235 = vcmask 7168
    %v236 = vsel %vm235, %v233, -inf
    %v237 = vsel %vm235, %v234, -inf
    %v238 = vmax.f32 %v236, %v237
    %v239 = vrot.slane %v238, 4
    %v240 = vmax.f32 %v238, %v239
    %v241 = vrot.slane %v240, 2
    %v242 = vmax.f32 %v240, %v241
    %v243 = vrot.slane %v242, 1
    %v244 = vmax.f32 %v242, %v243
    %vm245 = vcmp.eq.f32.partialorder %v233, %v244
    %vm246 = vcmp.eq.f32.partialorder %v234, %v244
    %v247 = vsel %vm245, %v44, 16.0
    %v248 = vsel %vm246, %v45, 16.0
    %v249 = vsel %vm235, %v247, inf
    %v250 = vsel %vm235, %v248, inf
    %v251 = vmin.f32 %v249, %v250
    %v252 = vrot.slane %v251, 4
    %v253 = vmin.f32 %v251, %v252
    %v254 = vrot.slane %v253, 2
    %v255 = vmin.f32 %v253, %v254
    %v256 = vrot.slane %v255, 1
    %v257 = vmin.f32 %v255, %v256
    %vm258 = vcmp.eq.f32.partialorder %v44, %v257
    %vm259 = vcmp.eq.f32.partialorder %v45, %v257
    %v260 = vsel %vm258, 1, 0
    %v261 = vsel %vm259, 1, 0
    %v262 = vcvt.s32.f32 %v260
    %v263 = vcvt.s32.f32 %v261
    %v264 = vadd.f32 %v262, 0.0
    %v265 = vadd.f32 %v263, 0.0
    %vm266 = vcmp.gt.f32.partialorder %v262, 0.0
    %vm267 = vcmp.gt.f32.partialorder %v263, 0.0
    %v268 = vsel %vm266, -inf, %v233
    %v269 = vsel %vm267, -inf, %v234
    %v270 = vsel %vm235, %v268, -inf
    %v271 = vsel %vm235, %v269, -inf
    %v272 = vmax.f32 %v270, %v271
    %v273 = vrot.slane %v272, 4
    %v274 = vmax.f32 %v272, %v273
    %v275 = vrot.slane %v274, 2
    %v276 = vmax.f32 %v274, %v275
    %v277 = vrot.slane %v276, 1
    %v278 = vmax.f32 %v276, %v277
    %vm279 = vcmp.eq.f32.partialorder %v268, %v278
    %vm280 = vcmp.eq.f32.partialorder %v269, %v278
    %v281 = vsel %vm279, %v44, 16.0
    %v282 = vsel %vm280, %v45, 16.0
    %v283 = vsel %vm235, %v281, inf
    %v284 = vsel %vm235, %v282, inf
    %v285 = vmin.f32 %v283, %v284
    %v286 = vrot.slane %v285, 4
    %v287 = vmin.f32 %v285, %v286
    %v288 = vrot.slane %v287, 2
    %v289 = vmin.f32 %v287, %v288
    %v290 = vrot.slane %v289, 1
    %v291 = vmin.f32 %v289, %v290
    %vm292 = vcmp.eq.f32.partialorder %v44, %v291
    %vm293 = vcmp.eq.f32.partialorder %v45, %v291
    %v294 = vsel %vm292, 1, 0
    %v295 = vsel %vm293, 1, 0
    %v296 = vcvt.s32.f32 %v294
    %v297 = vcvt.s32.f32 %v295
    %v298 = vadd.f32 %v264, %v296
    %v299 = vadd.f32 %v265, %v297
    %vm300 = vcmp.gt.f32.partialorder %v296, 0.0
    %vm301 = vcmp.gt.f32.partialorder %v297, 0.0
    %v302 = vsel %vm300, -inf, %v268
    %v303 = vsel %vm301, -inf, %v269
    %v304 = vsel %vm235, %v302, -inf
    %v305 = vsel %vm235, %v303, -inf
    %v306 = vmax.f32 %v304, %v305
    %v307 = vrot.slane %v306, 4
    %v308 = vmax.f32 %v306, %v307
    %v309 = vrot.slane %v308, 2
    %v310 = vmax.f32 %v308, %v309
    %v311 = vrot.slane %v310, 1
    %v312 = vmax.f32 %v310, %v311
    %vm313 = vcmp.eq.f32.partialorder %v302, %v312
    %vm314 = vcmp.eq.f32.partialorder %v303, %v312
    %v315 = vsel %vm313, %v44, 16.0
    %v316 = vsel %vm314, %v45, 16.0
    %v317 = vsel %vm235, %v315, inf
    %v318 = vsel %vm235, %v316, inf
    %v319 = vmin.f32 %v317, %v318
    %v320 = vrot.slane %v319, 4
    %v321 = vmin.f32 %v319, %v320
    %v322 = vrot.slane %v321, 2
    %v323 = vmin.f32 %v321, %v322
    %v324 = vrot.slane %v323, 1
    %v325 = vmin.f32 %v323, %v324
    %vm326 = vcmp.eq.f32.partialorder %v44, %v325
    %vm327 = vcmp.eq.f32.partialorder %v45, %v325
    %v328 = vsel %vm326, 1, 0
    %v329 = vsel %vm327, 1, 0
    %v330 = vcvt.s32.f32 %v328
    %v331 = vcvt.s32.f32 %v329
    %v332 = vadd.f32 %v298, %v330
    %v333 = vadd.f32 %v299, %v331
    %vm334 = vcmp.gt.f32.partialorder %v330, 0.0
    %vm335 = vcmp.gt.f32.partialorder %v331, 0.0
    %v336 = vsel %vm334, -inf, %v302
    %v337 = vsel %vm335, -inf, %v303
    %v338 = vsel %vm235, %v336, -inf
    %v339 = vsel %vm235, %v337, -inf
    %v340 = vmax.f32 %v338, %v339
    %v341 = vrot.slane %v340, 4
    %v342 = vmax.f32 %v340, %v341
    %v343 = vrot.slane %v342, 2
    %v344 = vmax.f32 %v342, %v343
    %v345 = vrot.slane %v344, 1
    %v346 = vmax.f32 %v344, %v345
    %vm347 = vcmp.eq.f32.partialorder %v336, %v346
    %vm348 = vcmp.eq.f32.partialorder %v337, %v346
    %v349 = vsel %vm347, %v44, 16.0
    %v350 = vsel %vm348, %v45, 16.0
    %v351 = vsel %vm235, %v349, inf
    %v352 = vsel %vm235, %v350, inf
    %v353 = vmin.f32 %v351, %v352
    %v354 = vrot.slane %v353, 4
    %v355 = vmin.f32 %v353, %v354
    %v356 = vrot.slane %v355, 2
    %v357 = vmin.f32 %v355, %v356
    %v358 = vrot.slane %v357, 1
    %v359 = vmin.f32 %v357, %v358
    %vm360 = vcmp.eq.f32.partialorder %v44, %v359
    %vm361 = vcmp.eq.f32.partialorder %v45, %v359
    %v362 = vsel %vm360, 1, 0
    %v363 = vsel %vm361, 1, 0
    %v364 = vcvt.s32.f32 %v362
    %v365 = vcvt.s32.f32 %v363
    %v366 = vadd.f32 %v332, %v364
    %v367 = vadd.f32 %v333, %v365
    %vm368 = vcmp.gt.f32.partialorder %v364, 0.0
    %vm369 = vcmp.gt.f32.partialorder %v365, 0.0
    %v370 = vsel %vm368, -inf, %v336
    %v371 = vsel %vm369, -inf, %v337
    %v372 = vsel %vm235, %v370, -inf
    %v373 = vsel %vm235, %v371, -inf
    %v374 = vmax.f32 %v372, %v373
    %v375 = vrot.slane %v374, 4
    %v376 = vmax.f32 %v374, %v375
    %v377 = vrot.slane %v376, 2
    %v378 = vmax.f32 %v376, %v377
    %v379 = vrot.slane %v378, 1
    %v380 = vmax.f32 %v378, %v379
    %vm381 = vcmp.eq.f32.partialorder %v370, %v380
    %vm382 = vcmp.eq.f32.partialorder %v371, %v380
    %v383 = vsel %vm381, %v44, 16.0
    %v384 = vsel %vm382, %v45, 16.0
    %v385 = vsel %vm235, %v383, inf
    %v386 = vsel %vm235, %v384, inf
    %v387 = vmin.f32 %v385, %v386
    %v388 = vrot.slane %v387, 4
    %v389 = vmin.f32 %v387, %v388
    %v390 = vrot.slane %v389, 2
    %v391 = vmin.f32 %v389, %v390
    %v392 = vrot.slane %v391, 1
    %v393 = vmin.f32 %v391, %v392
    %vm394 = vcmp.eq.f32.partialorder %v44, %v393
    %vm395 = vcmp.eq.f32.partialorder %v45, %v393
    %v396 = vsel %vm394, 1, 0
    %v397 = vsel %vm395, 1, 0
    %v398 = vcvt.s32.f32 %v396
    %v399 = vcvt.s32.f32 %v397
    %v400 = vadd.f32 %v366, %v398
    %v401 = vadd.f32 %v367, %v399
    %vm402 = vcmp.gt.f32.partialorder %v398, 0.0
    %vm403 = vcmp.gt.f32.partialorder %v399, 0.0
    %v404 = vsel %vm402, -inf, %v370
    %v405 = vsel %vm403, -inf, %v371
    %v406 = vsel %vm235, %v404, -inf
    %v407 = vsel %vm235, %v405, -inf
    %v408 = vmax.f32 %v406, %v407
    %v409 = vrot.slane %v408, 4
    %v410 = vmax.f32 %v408, %v409
    %v411 = vrot.slane %v410, 2
    %v412 = vmax.f32 %v410, %v411
    %v413 = vrot.slane %v412, 1
    %v414 = vmax.f32 %v412, %v413
    %vm415 = vcmp.eq.f32.partialorder %v404, %v414
    %vm416 = vcmp.eq.f32.partialorder %v405, %v414
    %v417 = vsel %vm415, %v44, 16.0
    %v418 = vsel %vm416, %v45, 16.0
    %v419 = vsel %vm235, %v417, inf
    %v420 = vsel %vm235, %v418, inf
    %v421 = vmin.f32 %v419, %v420
    %v422 = vrot.slane %v421, 4
    %v423 = vmin.f32 %v421, %v422
    %v424 = vrot.slane %v423, 2
    %v425 = vmin.f32 %v423, %v424
    %v426 = vrot.slane %v425, 1
    %v427 = vmin.f32 %v425, %v426
    %vm428 = vcmp.eq.f32.partialorder %v44, %v427
    %vm429 = vcmp.eq.f32.partialorder %v45, %v427
    %v430 = vsel %vm428, 1, 0
    %v431 = vsel %vm429, 1, 0
    %v432 = vcvt.s32.f32 %v430
    %v433 = vcvt.s32.f32 %v431
    %v434 = vadd.f32 %v400, %v432
    %v435 = vadd.f32 %v401, %v433
    %vm436 = vcmp.gt.f32.partialorder %v432, 0.0
    %vm437 = vcmp.gt.f32.partialorder %v433, 0.0
    %v438 = vsel %vm436, -inf, %v404
    %v439 = vsel %vm437, -inf, %v405
    %v440 = vsel %vm235, %v438, -inf
    %v441 = vsel %vm235, %v439, -inf
    %v442 = vmax.f32 %v440, %v441
    %v443 = vrot.slane %v442, 4
    %v444 = vmax.f32 %v442, %v443
    %v445 = vrot.slane %v444, 2
    %v446 = vmax.f32 %v444, %v445
    %v447 = vrot.slane %v446, 1
    %v448 = vmax.f32 %v446, %v447
    %vm449 = vcmp.eq.f32.partialorder %v438, %v448
    %vm450 = vcmp.eq.f32.partialorder %v439, %v448
    %v451 = vsel %vm449, %v44, 16.0
    %v452 = vsel %vm450, %v45, 16.0
    %v453 = vsel %vm235, %v451, inf
    %v454 = vsel %vm235, %v452, inf
    %v455 = vmin.f32 %v453, %v454
    %v456 = vrot.slane %v455, 4
    %v457 = vmin.f32 %v455, %v456
    %v458 = vrot.slane %v457, 2
    %v459 = vmin.f32 %v457, %v458
    %v460 = vrot.slane %v459, 1
    %v461 = vmin.f32 %v459, %v460
    %vm462 = vcmp.eq.f32.partialorder %v44, %v461
    %vm463 = vcmp.eq.f32.partialorder %v45, %v461
    %v464 = vsel %vm462, 1, 0
    %v465 = vsel %vm463, 1, 0
    %v466 = vcvt.s32.f32 %v464
    %v467 = vcvt.s32.f32 %v465
    %v468 = vadd.f32 %v434, %v466
    %v469 = vadd.f32 %v435, %v467
    %vm470 = vcmp.gt.f32.partialorder %v466, 0.0
    %vm471 = vcmp.gt.f32.partialorder %v467, 0.0
    %v472 = vsel %vm470, -inf, %v438
    %v473 = vsel %vm471, -inf, %v439
    %v474 = vsel %vm235, %v472, -inf
    %v475 = vsel %vm235, %v473, -inf
    %v476 = vmax.f32 %v474, %v475
    %v477 = vrot.slane %v476, 4
    %v478 = vmax.f32 %v476, %v477
    %v479 = vrot.slane %v478, 2
    %v480 = vmax.f32 %v478, %v479
    %v481 = vrot.slane %v480, 1
    %v482 = vmax.f32 %v480, %v481
    %vm483 = vcmp.eq.f32.partialorder %v472, %v482
    %vm484 = vcmp.eq.f32.partialorder %v473, %v482
    %v485 = vsel %vm483, %v44, 16.0
    %v486 = vsel %vm484, %v45, 16.0
    %v487 = vsel %vm235, %v485, inf
    %v488 = vsel %vm235, %v486, inf
    %v489 = vmin.f32 %v487, %v488
    %v490 = vrot.slane %v489, 4
    %v491 = vmin.f32 %v489, %v490
    %v492 = vrot.slane %v491, 2
    %v493 = vmin.f32 %v491, %v492
    %v494 = vrot.slane %v493, 1
    %v495 = vmin.f32 %v493, %v494
    %vm496 = vcmp.eq.f32.partialorder %v44, %v495
    %vm497 = vcmp.eq.f32.partialorder %v45, %v495
    %v498 = vsel %vm496, 1, 0
    %v499 = vsel %vm497, 1, 0
    %v500 = vcvt.s32.f32 %v498
    %v501 = vcvt.s32.f32 %v499
    %v502 = vadd.f32 %v468, %v500
    %v503 = vadd.f32 %v469, %v501
    %vm504 = vcmp.gt.f32.partialorder %v500, 0.0
    %vm505 = vcmp.gt.f32.partialorder %v501, 0.0
    %v506 = vsel %vm504, -inf, %v472
    %v507 = vsel %vm505, -inf, %v473
    %v508 = vsel %vm235, %v506, -inf
    %v509 = vsel %vm235, %v507, -inf
    %v510 = vmax.f32 %v508, %v509
    %v511 = vrot.slane %v510, 4
    %v512 = vmax.f32 %v510, %v511
    %v513 = vrot.slane %v512, 2
    %v514 = vmax.f32 %v512, %v513
    %v515 = vrot.slane %v514, 1
    %v516 = vmax.f32 %v514, %v515
    %vm517 = vcmp.eq.f32.partialorder %v506, %v516
    %vm518 = vcmp.eq.f32.partialorder %v507, %v516
    %v519 = vsel %vm517, %v44, 16.0
    %v520 = vsel %vm518, %v45, 16.0
    %v521 = vsel %vm235, %v519, inf
    %v522 = vsel %vm235, %v520, inf
    %v523 = vmin.f32 %v521, %v522
    %v524 = vrot.slane %v523, 4
    %v525 = vmin.f32 %v523, %v524
    %v526 = vrot.slane %v525, 2
    %v527 = vmin.f32 %v525, %v526
    %v528 = vrot.slane %v527, 1
    %v529 = vmin.f32 %v527, %v528
    %vm530 = vcmp.eq.f32.partialorder %v44, %v529
    %vm531 = vcmp.eq.f32.partialorder %v45, %v529
    %v532 = vsel %vm530, 1, 0
    %v533 = vsel %vm531, 1, 0
    %v534 = vcvt.s32.f32 %v532
    %v535 = vcvt.s32.f32 %v533
    %v536 = vadd.f32 %v502, %v534
    %v537 = vadd.f32 %v503, %v535
    %vm538 = vcmp.gt.f32.partialorder %v534, 0.0
    %vm539 = vcmp.gt.f32.partialorder %v535, 0.0
    %v540 = vsel %vm538, -inf, %v506
    %v541 = vsel %vm539, -inf, %v507
    %v542 = vsel %vm235, %v540, -inf
    %v543 = vsel %vm235, %v541, -inf
    %v544 = vmax.f32 %v542, %v543
    %v545 = vrot.slane %v544, 4
    %v546 = vmax.f32 %v544, %v545
    %v547 = vrot.slane %v546, 2
    %v548 = vmax.f32 %v546, %v547
    %v549 = vrot.slane %v548, 1
    %v550 = vmax.f32 %v548, %v549
    %vm551 = vcmp.eq.f32.partialorder %v540, %v550
    %vm552 = vcmp.eq.f32.partialorder %v541, %v550
    %v553 = vsel %vm551, %v44, 16.0
    %v554 = vsel %vm552, %v45, 16.0
    %v555 = vsel %vm235, %v553, inf
    %v556 = vsel %vm235, %v554, inf
    %v557 = vmin.f32 %v555, %v556
    %v558 = vrot.slane %v557, 4
    %v559 = vmin.f32 %v557, %v558
    %v560 = vrot.slane %v559, 2
    %v561 = vmin.f32 %v559, %v560
    %v562 = vrot.slane %v561, 1
    %v563 = vmin.f32 %v561, %v562
    %vm564 = vcmp.eq.f32.partialorder %v44, %v563
    %vm565 = vcmp.eq.f32.partialorder %v45, %v563
    %v566 = vsel %vm564, 1, 0
    %v567 = vsel %vm565, 1, 0
    %v568 = vcvt.s32.f32 %v566
    %v569 = vcvt.s32.f32 %v567
    %v570 = vadd.f32 %v536, %v568
    %v571 = vadd.f32 %v537, %v569
    %vm572 = vcmp.gt.f32.partialorder %v568, 0.0
    %vm573 = vcmp.gt.f32.partialorder %v569, 0.0
    %v574 = vsel %vm572, -inf, %v540
    %v575 = vsel %vm573, -inf, %v541
    %v576 = vsel %vm235, %v574, -inf
    %v577 = vsel %vm235, %v575, -inf
    %v578 = vmax.f32 %v576, %v577
    %v579 = vrot.slane %v578, 4
    %v580 = vmax.f32 %v578, %v579
    %v581 = vrot.slane %v580, 2
    %v582 = vmax.f32 %v580, %v581
    %v583 = vrot.slane %v582, 1
    %v584 = vmax.f32 %v582, %v583
    %vm585 = vcmp.eq.f32.partialorder %v574, %v584
    %vm586 = vcmp.eq.f32.partialorder %v575, %v584
    %v587 = vsel %vm585, %v44, 16.0
    %v588 = vsel %vm586, %v45, 16.0
    %v589 = vsel %vm235, %v587, inf
    %v590 = vsel %vm235, %v588, inf
    %v591 = vmin.f32 %v589, %v590
    %v592 = vrot.slane %v591, 4
    %v593 = vmin.f32 %v591, %v592
    %v594 = vrot.slane %v593, 2
    %v595 = vmin.f32 %v593, %v594
    %v596 = vrot.slane %v595, 1
    %v597 = vmin.f32 %v595, %v596
    %vm598 = vcmp.eq.f32.partialorder %v44, %v597
    %vm599 = vcmp.eq.f32.partialorder %v45, %v597
    %v600 = vsel %vm598, 1, 0
    %v601 = vsel %vm599, 1, 0
    %v602 = vcvt.s32.f32 %v600
    %v603 = vcvt.s32.f32 %v601
    %v604 = vadd.f32 %v570, %v602
    %v605 = vadd.f32 %v571, %v603
    %vm606 = vcmp.gt.f32.partialorder %v602, 0.0
    %vm607 = vcmp.gt.f32.partialorder %v603, 0.0
    %v608 = vsel %vm606, -inf, %v574
    %v609 = vsel %vm607, -inf, %v575
    %v610 = vsel %vm235, %v608, -inf
    %v611 = vsel %vm235, %v609, -inf
    %v612 = vmax.f32 %v610, %v611
    %v613 = vrot.slane %v612, 4
    %v614 = vmax.f32 %v612, %v613
    %v615 = vrot.slane %v614, 2
    %v616 = vmax.f32 %v614, %v615
    %v617 = vrot.slane %v616, 1
    %v618 = vmax.f32 %v616, %v617
    %vm619 = vcmp.eq.f32.partialorder %v608, %v618
    %vm620 = vcmp.eq.f32.partialorder %v609, %v618
    %v621 = vsel %vm619, %v44, 16.0
    %v622 = vsel %vm620, %v45, 16.0
    %v623 = vsel %vm235, %v621, inf
    %v624 = vsel %vm235, %v622, inf
    %v625 = vmin.f32 %v623, %v624
    %v626 = vrot.slane %v625, 4
    %v627 = vmin.f32 %v625, %v626
    %v628 = vrot.slane %v627, 2
    %v629 = vmin.f32 %v627, %v628
    %v630 = vrot.slane %v629, 1
    %v631 = vmin.f32 %v629, %v630
    %vm632 = vcmp.eq.f32.partialorder %v44, %v631
    %vm633 = vcmp.eq.f32.partialorder %v45, %v631
    %v634 = vsel %vm632, 1, 0
    %v635 = vsel %vm633, 1, 0
    %v636 = vcvt.s32.f32 %v634
    %v637 = vcvt.s32.f32 %v635
    %v638 = vadd.f32 %v604, %v636
    %v639 = vadd.f32 %v605, %v637
    %vm640 = vcmp.gt.f32.partialorder %v636, 0.0
    %vm641 = vcmp.gt.f32.partialorder %v637, 0.0
    %v642 = vsel %vm640, -inf, %v608
    %v643 = vsel %vm641, -inf, %v609
    %v644 = vsel %vm235, %v642, -inf
    %v645 = vsel %vm235, %v643, -inf
    %v646 = vmax.f32 %v644, %v645
    %v647 = vrot.slane %v646, 4
    %v648 = vmax.f32 %v646, %v647
    %v649 = vrot.slane %v648, 2
    %v650 = vmax.f32 %v648, %v649
    %v651 = vrot.slane %v650, 1
    %v652 = vmax.f32 %v650, %v651
    %vm653 = vcmp.eq.f32.partialorder %v642, %v652
    %vm654 = vcmp.eq.f32.partialorder %v643, %v652
    %v655 = vsel %vm653, %v44, 16.0
    %v656 = vsel %vm654, %v45, 16.0
    %v657 = vsel %vm235, %v655, inf
    %v658 = vsel %vm235, %v656, inf
    %v659 = vmin.f32 %v657, %v658
    %v660 = vrot.slane %v659, 4
    %v661 = vmin.f32 %v659, %v660
    %v662 = vrot.slane %v661, 2
    %v663 = vmin.f32 %v661, %v662
    %v664 = vrot.slane %v663, 1
    %v665 = vmin.f32 %v663, %v664
    %vm666 = vcmp.eq.f32.partialorder %v44, %v665
    %vm667 = vcmp.eq.f32.partialorder %v45, %v665
    %v668 = vsel %vm666, 1, 0
    %v669 = vsel %vm667, 1, 0
    %v670 = vcvt.s32.f32 %v668
    %v671 = vcvt.s32.f32 %v669
    %v672 = vadd.f32 %v638, %v670
    %v673 = vadd.f32 %v639, %v671
    %v674 = vmul.f32 %v230, %v672
    %v675 = vmul.f32 %v231, %v673
    %677 = vset.pattern.permute.xlu0 0
    %678 = vperm.xlu0 %677, %v674
    %v679 = vpop.permute.xlu0 %678
    %682 = vset.pattern.permute.xlu0 0
    %683 = vperm.xlu0 %682, %v675
    %v684 = vpop.permute.xlu0 %683
    %v686 = vmul.f32 %v37, %v679
    %v687 = vmul.f32 %v38, %v684
    %692 = vrot.lane.b32.xlu0 %v46, 126
    %v693 = vpop.permute.xlu0 %692
    %694 = vrot.lane.b32.xlu0 %v47, 126
    %v695 = vpop.permute.xlu0 %694
    %696 = vrot.lane.b32.xlu0 %v48, 126
    %v697 = vpop.permute.xlu0 %696
    %698 = vrot.lane.b32.xlu0 %v49, 126
    %v699 = vpop.permute.xlu0 %698
    %v705 = vsel %vm50, %v686, 0
    %v708 = vsel %vm50, %v687, 0
    %710 = vmatprep.subr.mxu0 0.0
    %711 = vmatpush1.msra.mxu0 0.0
    %712 = vmatprep.subr.mxu0 0.0
    %713 = vmatpush1.msra.mxu0 0.0
    %714 = vmatprep.subr.mxu0 0.0
    %715 = vmatpush1.msra.mxu0 0.0
    %716 = vmatprep.subr.mxu0 0.0
    %717 = vmatpush1.msra.mxu0 0.0
    %718 = vmatprep.subr.mxu0 0.0
    %719 = vmatpush1.msra.mxu0 0.0
    %720 = vmatprep.subr.mxu0 0.0
    %721 = vmatpush1.msra.mxu0 0.0
    %722 = vmatprep.subr.mxu0 0.0
    %723 = vmatpush1.msra.mxu0 0.0
    %724 = vmatprep.subr.mxu0 0.0
    %725 = vmatpush1.msra.mxu0 0.0
    %726 = vmatprep.subr.mxu0 0.0
    %727 = vmatpush1.msra.mxu0 0.0
    %728 = vmatprep.subr.mxu0 0.0
    %729 = vmatpush1.msra.mxu0 0.0
    %730 = vmatprep.subr.mxu0 0.0
    %731 = vmatpush1.msra.mxu0 0.0
    %732 = vmatprep.subr.mxu0 0.0
    %733 = vmatpush1.msra.mxu0 0.0
    %734 = vmatprep.subr.mxu0 0.0
    %735 = vmatpush1.msra.mxu0 %v699
    %736 = vmatprep.subr.mxu0 0.0
    %737 = vmatpush1.msra.mxu0 %v697
    %738 = vmatprep.subr.mxu0 0.0
    %739 = vmatpush1.msra.mxu0 %v695
    %740 = vmatprep.subr.mxu0 0.0
    %741 = vmatpush1.msra.mxu0 %v693
    %742 = vmatprep.subr.mxu0 0.0
    %743 = vmatpush2.msra.mxu0 0.0
    %744 = vmatprep.subr.mxu0 0.0
    %745 = vmatpush2.msra.mxu0 0.0
    %746 = vmatprep.subr.mxu0 0.0
    %747 = vmatpush2.msra.mxu0 0.0
    %748 = vmatprep.subr.mxu0 0.0
    %749 = vmatpush2.msra.mxu0 0.0
    %750 = vmatprep.subr.mxu0 0.0
    %751 = vmatpush2.msra.mxu0 0.0
    %752 = vmatprep.subr.mxu0 0.0
    %753 = vmatpush2.msra.mxu0 0.0
    %754 = vmatprep.subr.mxu0 0.0
    %755 = vmatpush2.msra.mxu0 0.0
    %756 = vmatprep.subr.mxu0 0.0
    %757 = vmatpush2.msra.mxu0 0.0
    %758 = vmatprep.subr.mxu0 0.0
    %759 = vmatpush2.msra.mxu0 0.0
    %760 = vmatprep.subr.mxu0 0.0
    %761 = vmatpush2.msra.mxu0 0.0
    %762 = vmatprep.subr.mxu0 0.0
    %763 = vmatpush2.msra.mxu0 0.0
    %764 = vmatprep.subr.mxu0 0.0
    %765 = vmatpush2.msra.mxu0 0.0
    %766 = vmatprep.subr.mxu0 0.0
    %767 = vmatpush2.msra.mxu0 0.0
    %768 = vmatprep.subr.mxu0 0.0
    %769 = vmatpush2.msra.mxu0 0.0
    %770 = vmatprep.subr.mxu0 0.0
    %771 = vmatpush2.msra.mxu0 0.0
    %772 = vmatprep.subr.mxu0 0.0
    %773 = vmatpush2.msra.mxu0 0.0
    %774 = vmatprep.mubr.f32.mxu0 0.0
    %775 = vmatmul.mubr.f32.gmra.mxu0 %v705
    %v776 = vpop.f32.mrf.mxu0
    %v777 = vadd.f32 0.0, %v776
    %v778 = vpop.f32.mrf.mxu0
    %779 = vmatprep.mubr.f32.mxu0 0.0
    %780 = vmatmul.mubr.f32.gmra.mxu0 %v708
    %v781 = vpop.f32.mrf.mxu0
    %v782 = vadd.f32 0.0, %v781
    %v783 = vpop.f32.mrf.mxu0
    %784 = vdwg.mxu0
    %s785 = sld [smem:[#allocation2 + $0x2]]
    %s786 = sld [smem:[#allocation2 + $0x3]]
    %789 = vrot.lane.b32.xlu0 %v777, 127
    %v790 = vpop.permute.xlu0 %789
    %791 = vrot.lane.b32.xlu0 %v782, 127
    %v792 = vpop.permute.xlu0 %791
    %795 = vmatprep.subr.mxu0 0.0
    %796 = vmatpush1.msra.mxu0 0.0
    %797 = vmatprep.subr.mxu0 0.0
    %798 = vmatpush1.msra.mxu0 0.0
    %799 = vmatprep.subr.mxu0 0.0
    %800 = vmatpush1.msra.mxu0 0.0
    %801 = vmatprep.subr.mxu0 0.0
    %802 = vmatpush1.msra.mxu0 0.0
    %803 = vmatprep.subr.mxu0 0.0
    %804 = vmatpush1.msra.mxu0 0.0
    %805 = vmatprep.subr.mxu0 0.0
    %806 = vmatpush1.msra.mxu0 0.0
    %807 = vmatprep.subr.mxu0 0.0
    %808 = vmatpush1.msra.mxu0 0.0
    %809 = vmatprep.subr.mxu0 0.0
    %810 = vmatpush1.msra.mxu0 0.0
    %811 = vmatprep.subr.mxu0 0.0
    %812 = vmatpush1.msra.mxu0 0.0
    %813 = vmatprep.subr.mxu0 0.0
    %814 = vmatpush1.msra.mxu0 0.0
    %815 = vmatprep.subr.mxu0 0.0
    %816 = vmatpush1.msra.mxu0 0.0
    %817 = vmatprep.subr.mxu0 0.0
    %818 = vmatpush1.msra.mxu0 0.0
    %819 = vmatprep.subr.mxu0 0.0
    %820 = vmatpush1.msra.mxu0 0.0
    %821 = vmatprep.subr.mxu0 0.0
    %822 = vmatpush1.msra.mxu0 0.0
    %823 = vmatprep.subr.mxu0 0.0
    %824 = vmatpush1.msra.mxu0 %v782
    %825 = vmatprep.subr.mxu0 0.0
    %826 = vmatpush1.msra.mxu0 %v777
    %827 = vmatprep.subr.mxu0 0.0
    %828 = vmatpush2.msra.mxu0 0.0
    %829 = vmatprep.subr.mxu0 0.0
    %830 = vmatpush2.msra.mxu0 0.0
    %831 = vmatprep.subr.mxu0 0.0
    %832 = vmatpush2.msra.mxu0 0.0
    %833 = vmatprep.subr.mxu0 0.0
    %834 = vmatpush2.msra.mxu0 0.0
    %835 = vmatprep.subr.mxu0 0.0
    %836 = vmatpush2.msra.mxu0 0.0
    %837 = vmatprep.subr.mxu0 0.0
    %838 = vmatpush2.msra.mxu0 0.0
    %839 = vmatprep.subr.mxu0 0.0
    %840 = vmatpush2.msra.mxu0 0.0
    %841 = vmatprep.subr.mxu0 0.0
    %842 = vmatpush2.msra.mxu0 0.0
    %843 = vmatprep.subr.mxu0 0.0
    %844 = vmatpush2.msra.mxu0 0.0
    %845 = vmatprep.subr.mxu0 0.0
    %846 = vmatpush2.msra.mxu0 0.0
    %847 = vmatprep.subr.mxu0 0.0
    %848 = vmatpush2.msra.mxu0 0.0
    %849 = vmatprep.subr.mxu0 0.0
    %850 = vmatpush2.msra.mxu0 0.0
    %851 = vmatprep.subr.mxu0 0.0
    %852 = vmatpush2.msra.mxu0 0.0
    %853 = vmatprep.subr.mxu0 0.0
    %854 = vmatpush2.msra.mxu0 0.0
    %855 = vmatprep.subr.mxu0 0.0
    %856 = vmatpush2.msra.mxu0 0.0
    %857 = vmatprep.subr.mxu0 0.0
    %858 = vmatpush2.msra.mxu0 0.0
    %859 = vmatprep.mubr.f32.mxu0 0.0
    %860 = vmatmul.mubr.f32.gmra.mxu0 %v144
    %v861 = vpop.f32.mrf.mxu0
    %v862 = vadd.f32 %v790, %v861
    %v863 = vpop.f32.mrf.mxu0
    %864 = vmatprep.mubr.f32.mxu0 0.0
    %865 = vmatmul.mubr.f32.gmra.mxu0 %v147
    %v866 = vpop.f32.mrf.mxu0
    %v867 = vadd.f32 %v792, %v866
    %v868 = vpop.f32.mrf.mxu0
    %869 = vdwg.mxu0
    %v870 = vstv %s785
    %v871 = vadd.f32 %v862, %v870
    %v872 = vadd.f32 %v867, %v870
    %v873 = vstv %s786
    %v874 = vmul.f32 %v871, %v873
    %v875 = vmul.f32 %v872, %v873
    %v876 = vtanh.pop %v874
    %v877 = vtanh.pop %v875
    %vm878 = vcmp.gt.f32.partialorder %v672, 0.0
    %vm879 = vcmp.gt.f32.partialorder %v673, 0.0
    %v880 = vsel %vm878, %v876, -inf
    %v881 = vsel %vm879, %v877, -inf
    %v882 = vsel %vm235, %v880, -inf
    %v883 = vsel %vm235, %v881, -inf
    %v884 = vmax.f32 %v882, %v883
    %v885 = vrot.slane %v884, 4
    %v886 = vmax.f32 %v884, %v885
    %v887 = vrot.slane %v886, 2
    %v888 = vmax.f32 %v886, %v887
    %v889 = vrot.slane %v888, 1
    %v890 = vmax.f32 %v888, %v889
    %vm891 = vcmp.eq.f32.partialorder %v880, %v890
    %vm892 = vcmp.eq.f32.partialorder %v881, %v890
    %v893 = vsel %vm891, %v44, 16.0
    %v894 = vsel %vm892, %v45, 16.0
    %v895 = vsel %vm235, %v893, inf
    %v896 = vsel %vm235, %v894, inf
    %v897 = vmin.f32 %v895, %v896
    %v898 = vrot.slane %v897, 4
    %v899 = vmin.f32 %v897, %v898
    %v900 = vrot.slane %v899, 2
    %v901 = vmin.f32 %v899, %v900
    %v902 = vrot.slane %v901, 1
    %v903 = vmin.f32 %v901, %v902
    %vm904 = vcmp.eq.f32.partialorder %v44, %v903
    %vm905 = vcmp.eq.f32.partialorder %v45, %v903
    %v906 = vsel %vm904, 1, 0
    %v907 = vsel %vm905, 1, 0
    %v908 = vcvt.s32.f32 %v906
    %v909 = vcvt.s32.f32 %v907
    %v910 = vadd.f32 %v908, 0.0
    %v911 = vadd.f32 %v909, 0.0
    %vm912 = vcmp.gt.f32.partialorder %v908, 0.0
    %vm913 = vcmp.gt.f32.partialorder %v909, 0.0
    %v914 = vsel %vm912, -inf, %v880
    %v915 = vsel %vm913, -inf, %v881
    %v916 = vsel %vm235, %v914, -inf
    %v917 = vsel %vm235, %v915, -inf
    %v918 = vmax.f32 %v916, %v917
    %v919 = vrot.slane %v918, 4
    %v920 = vmax.f32 %v918, %v919
    %v921 = vrot.slane %v920, 2
    %v922 = vmax.f32 %v920, %v921
    %v923 = vrot.slane %v922, 1
    %v924 = vmax.f32 %v922, %v923
    %vm925 = vcmp.eq.f32.partialorder %v914, %v924
    %vm926 = vcmp.eq.f32.partialorder %v915, %v924
    %v927 = vsel %vm925, %v44, 16.0
    %v928 = vsel %vm926, %v45, 16.0
    %v929 = vsel %vm235, %v927, inf
    %v930 = vsel %vm235, %v928, inf
    %v931 = vmin.f32 %v929, %v930
    %v932 = vrot.slane %v931, 4
    %v933 = vmin.f32 %v931, %v932
    %v934 = vrot.slane %v933, 2
    %v935 = vmin.f32 %v933, %v934
    %v936 = vrot.slane %v935, 1
    %v937 = vmin.f32 %v935, %v936
    %vm938 = vcmp.eq.f32.partialorder %v44, %v937
    %vm939 = vcmp.eq.f32.partialorder %v45, %v937
    %v940 = vsel %vm938, 1, 0
    %v941 = vsel %vm939, 1, 0
    %v942 = vcvt.s32.f32 %v940
    %v943 = vcvt.s32.f32 %v941
    %v944 = vadd.f32 %v910, %v942
    %v945 = vadd.f32 %v911, %v943
    %vm946 = vcmp.gt.f32.partialorder %v942, 0.0
    %vm947 = vcmp.gt.f32.partialorder %v943, 0.0
    %v948 = vsel %vm946, -inf, %v914
    %v949 = vsel %vm947, -inf, %v915
    %v950 = vsel %vm235, %v948, -inf
    %v951 = vsel %vm235, %v949, -inf
    %v952 = vmax.f32 %v950, %v951
    %v953 = vrot.slane %v952, 4
    %v954 = vmax.f32 %v952, %v953
    %v955 = vrot.slane %v954, 2
    %v956 = vmax.f32 %v954, %v955
    %v957 = vrot.slane %v956, 1
    %v958 = vmax.f32 %v956, %v957
    %vm959 = vcmp.eq.f32.partialorder %v948, %v958
    %vm960 = vcmp.eq.f32.partialorder %v949, %v958
    %v961 = vsel %vm959, %v44, 16.0
    %v962 = vsel %vm960, %v45, 16.0
    %v963 = vsel %vm235, %v961, inf
    %v964 = vsel %vm235, %v962, inf
    %v965 = vmin.f32 %v963, %v964
    %v966 = vrot.slane %v965, 4
    %v967 = vmin.f32 %v965, %v966
    %v968 = vrot.slane %v967, 2
    %v969 = vmin.f32 %v967, %v968
    %v970 = vrot.slane %v969, 1
    %v971 = vmin.f32 %v969, %v970
    %vm972 = vcmp.eq.f32.partialorder %v44, %v971
    %vm973 = vcmp.eq.f32.partialorder %v45, %v971
    %v974 = vsel %vm972, 1, 0
    %v975 = vsel %vm973, 1, 0
    %v976 = vcvt.s32.f32 %v974
    %v977 = vcvt.s32.f32 %v975
    %v978 = vadd.f32 %v944, %v976
    %v979 = vadd.f32 %v945, %v977
    %vm980 = vcmp.gt.f32.partialorder %v976, 0.0
    %vm981 = vcmp.gt.f32.partialorder %v977, 0.0
    %v982 = vsel %vm980, -inf, %v948
    %v983 = vsel %vm981, -inf, %v949
    %v984 = vsel %vm235, %v982, -inf
    %v985 = vsel %vm235, %v983, -inf
    %v986 = vmax.f32 %v984, %v985
    %v987 = vrot.slane %v986, 4
    %v988 = vmax.f32 %v986, %v987
    %v989 = vrot.slane %v988, 2
    %v990 = vmax.f32 %v988, %v989
    %v991 = vrot.slane %v990, 1
    %v992 = vmax.f32 %v990, %v991
    %vm993 = vcmp.eq.f32.partialorder %v982, %v992
    %vm994 = vcmp.eq.f32.partialorder %v983, %v992
    %v995 = vsel %vm993, %v44, 16.0
    %v996 = vsel %vm994, %v45, 16.0
    %v997 = vsel %vm235, %v995, inf
    %v998 = vsel %vm235, %v996, inf
    %v999 = vmin.f32 %v997, %v998
    %v1000 = vrot.slane %v999, 4
    %v1001 = vmin.f32 %v999, %v1000
    %v1002 = vrot.slane %v1001, 2
    %v1003 = vmin.f32 %v1001, %v1002
    %v1004 = vrot.slane %v1003, 1
    %v1005 = vmin.f32 %v1003, %v1004
    %vm1006 = vcmp.eq.f32.partialorder %v44, %v1005
    %vm1007 = vcmp.eq.f32.partialorder %v45, %v1005
    %v1008 = vsel %vm1006, 1, 0
    %v1009 = vsel %vm1007, 1, 0
    %v1010 = vcvt.s32.f32 %v1008
    %v1011 = vcvt.s32.f32 %v1009
    %v1012 = vadd.f32 %v978, %v1010
    %v1013 = vadd.f32 %v979, %v1011
    %vm1014 = vcmp.gt.f32.partialorder %v1010, 0.0
    %vm1015 = vcmp.gt.f32.partialorder %v1011, 0.0
    %v1016 = vsel %vm1014, -inf, %v982
    %v1017 = vsel %vm1015, -inf, %v983
    %v1018 = vsel %vm235, %v1016, -inf
    %v1019 = vsel %vm235, %v1017, -inf
    %v1020 = vmax.f32 %v1018, %v1019
    %v1021 = vrot.slane %v1020, 4
    %v1022 = vmax.f32 %v1020, %v1021
    %v1023 = vrot.slane %v1022, 2
    %v1024 = vmax.f32 %v1022, %v1023
    %v1025 = vrot.slane %v1024, 1
    %v1026 = vmax.f32 %v1024, %v1025
    %vm1027 = vcmp.eq.f32.partialorder %v1016, %v1026
    %vm1028 = vcmp.eq.f32.partialorder %v1017, %v1026
    %v1029 = vsel %vm1027, %v44, 16.0
    %v1030 = vsel %vm1028, %v45, 16.0
    %v1031 = vsel %vm235, %v1029, inf
    %v1032 = vsel %vm235, %v1030, inf
    %v1033 = vmin.f32 %v1031, %v1032
    %v1034 = vrot.slane %v1033, 4
    %v1035 = vmin.f32 %v1033, %v1034
    %v1036 = vrot.slane %v1035, 2
    %v1037 = vmin.f32 %v1035, %v1036
    %v1038 = vrot.slane %v1037, 1
    %v1039 = vmin.f32 %v1037, %v1038
    %vm1040 = vcmp.eq.f32.partialorder %v44, %v1039
    %vm1041 = vcmp.eq.f32.partialorder %v45, %v1039
    %v1042 = vsel %vm1040, 1, 0
    %v1043 = vsel %vm1041, 1, 0
    %v1044 = vcvt.s32.f32 %v1042
    %v1045 = vcvt.s32.f32 %v1043
    %v1046 = vadd.f32 %v1012, %v1044
    %v1047 = vadd.f32 %v1013, %v1045
    %vm1048 = vcmp.gt.f32.partialorder %v1044, 0.0
    %vm1049 = vcmp.gt.f32.partialorder %v1045, 0.0
    %v1050 = vsel %vm1048, -inf, %v1016
    %v1051 = vsel %vm1049, -inf, %v1017
    %v1052 = vsel %vm235, %v1050, -inf
    %v1053 = vsel %vm235, %v1051, -inf
    %v1054 = vmax.f32 %v1052, %v1053
    %v1055 = vrot.slane %v1054, 4
    %v1056 = vmax.f32 %v1054, %v1055
    %v1057 = vrot.slane %v1056, 2
    %v1058 = vmax.f32 %v1056, %v1057
    %v1059 = vrot.slane %v1058, 1
    %v1060 = vmax.f32 %v1058, %v1059
    %vm1061 = vcmp.eq.f32.partialorder %v1050, %v1060
    %vm1062 = vcmp.eq.f32.partialorder %v1051, %v1060
    %v1063 = vsel %vm1061, %v44, 16.0
    %v1064 = vsel %vm1062, %v45, 16.0
    %v1065 = vsel %vm235, %v1063, inf
    %v1066 = vsel %vm235, %v1064, inf
    %v1067 = vmin.f32 %v1065, %v1066
    %v1068 = vrot.slane %v1067, 4
    %v1069 = vmin.f32 %v1067, %v1068
    %v1070 = vrot.slane %v1069, 2
    %v1071 = vmin.f32 %v1069, %v1070
    %v1072 = vrot.slane %v1071, 1
    %v1073 = vmin.f32 %v1071, %v1072
    %vm1074 = vcmp.eq.f32.partialorder %v44, %v1073
    %vm1075 = vcmp.eq.f32.partialorder %v45, %v1073
    %v1076 = vsel %vm1074, 1, 0
    %v1077 = vsel %vm1075, 1, 0
    %v1078 = vcvt.s32.f32 %v1076
    %v1079 = vcvt.s32.f32 %v1077
    %v1080 = vadd.f32 %v1046, %v1078
    %v1081 = vadd.f32 %v1047, %v1079
    %vm1082 = vcmp.gt.f32.partialorder %v1078, 0.0
    %vm1083 = vcmp.gt.f32.partialorder %v1079, 0.0
    %v1084 = vsel %vm1082, -inf, %v1050
    %v1085 = vsel %vm1083, -inf, %v1051
    %v1086 = vsel %vm235, %v1084, -inf
    %v1087 = vsel %vm235, %v1085, -inf
    %v1088 = vmax.f32 %v1086, %v1087
    %v1089 = vrot.slane %v1088, 4
    %v1090 = vmax.f32 %v1088, %v1089
    %v1091 = vrot.slane %v1090, 2
    %v1092 = vmax.f32 %v1090, %v1091
    %v1093 = vrot.slane %v1092, 1
    %v1094 = vmax.f32 %v1092, %v1093
    %vm1095 = vcmp.eq.f32.partialorder %v1084, %v1094
    %vm1096 = vcmp.eq.f32.partialorder %v1085, %v1094
    %v1097 = vsel %vm1095, %v44, 16.0
    %v1098 = vsel %vm1096, %v45, 16.0
    %v1099 = vsel %vm235, %v1097, inf
    %v1100 = vsel %vm235, %v1098, inf
    %v1101 = vmin.f32 %v1099, %v1100
    %v1102 = vrot.slane %v1101, 4
    %v1103 = vmin.f32 %v1101, %v1102
    %v1104 = vrot.slane %v1103, 2
    %v1105 = vmin.f32 %v1103, %v1104
    %v1106 = vrot.slane %v1105, 1
    %v1107 = vmin.f32 %v1105, %v1106
    %vm1108 = vcmp.eq.f32.partialorder %v44, %v1107
    %vm1109 = vcmp.eq.f32.partialorder %v45, %v1107
    %v1110 = vsel %vm1108, 1, 0
    %v1111 = vsel %vm1109, 1, 0
    %v1112 = vcvt.s32.f32 %v1110
    %v1113 = vcvt.s32.f32 %v1111
    %v1114 = vadd.f32 %v1080, %v1112
    %v1115 = vadd.f32 %v1081, %v1113
    %vm1116 = vcmp.gt.f32.partialorder %v1112, 0.0
    %vm1117 = vcmp.gt.f32.partialorder %v1113, 0.0
    %v1118 = vsel %vm1116, -inf, %v1084
    %v1119 = vsel %vm1117, -inf, %v1085
    %v1120 = vsel %vm235, %v1118, -inf
    %v1121 = vsel %vm235, %v1119, -inf
    %v1122 = vmax.f32 %v1120, %v1121
    %v1123 = vrot.slane %v1122, 4
    %v1124 = vmax.f32 %v1122, %v1123
    %v1125 = vrot.slane %v1124, 2
    %v1126 = vmax.f32 %v1124, %v1125
    %v1127 = vrot.slane %v1126, 1
    %v1128 = vmax.f32 %v1126, %v1127
    %vm1129 = vcmp.eq.f32.partialorder %v1118, %v1128
    %vm1130 = vcmp.eq.f32.partialorder %v1119, %v1128
    %v1131 = vsel %vm1129, %v44, 16.0
    %v1132 = vsel %vm1130, %v45, 16.0
    %v1133 = vsel %vm235, %v1131, inf
    %v1134 = vsel %vm235, %v1132, inf
    %v1135 = vmin.f32 %v1133, %v1134
    %v1136 = vrot.slane %v1135, 4
    %v1137 = vmin.f32 %v1135, %v1136
    %v1138 = vrot.slane %v1137, 2
    %v1139 = vmin.f32 %v1137, %v1138
    %v1140 = vrot.slane %v1139, 1
    %v1141 = vmin.f32 %v1139, %v1140
    %vm1142 = vcmp.eq.f32.partialorder %v44, %v1141
    %vm1143 = vcmp.eq.f32.partialorder %v45, %v1141
    %v1144 = vsel %vm1142, 1, 0
    %v1145 = vsel %vm1143, 1, 0
    %v1146 = vcvt.s32.f32 %v1144
    %v1147 = vcvt.s32.f32 %v1145
    %v1148 = vadd.f32 %v1114, %v1146
    %v1149 = vadd.f32 %v1115, %v1147
    %vm1150 = vcmp.gt.f32.partialorder %v1146, 0.0
    %vm1151 = vcmp.gt.f32.partialorder %v1147, 0.0
    %v1152 = vsel %vm1150, -inf, %v1118
    %v1153 = vsel %vm1151, -inf, %v1119
    %v1154 = vsel %vm235, %v1152, -inf
    %v1155 = vsel %vm235, %v1153, -inf
    %v1156 = vmax.f32 %v1154, %v1155
    %v1157 = vrot.slane %v1156, 4
    %v1158 = vmax.f32 %v1156, %v1157
    %v1159 = vrot.slane %v1158, 2
    %v1160 = vmax.f32 %v1158, %v1159
    %v1161 = vrot.slane %v1160, 1
    %v1162 = vmax.f32 %v1160, %v1161
    %vm1163 = vcmp.eq.f32.partialorder %v1152, %v1162
    %vm1164 = vcmp.eq.f32.partialorder %v1153, %v1162
    %v1165 = vsel %vm1163, %v44, 16.0
    %v1166 = vsel %vm1164, %v45, 16.0
    %v1167 = vsel %vm235, %v1165, inf
    %v1168 = vsel %vm235, %v1166, inf
    %v1169 = vmin.f32 %v1167, %v1168
    %v1170 = vrot.slane %v1169, 4
    %v1171 = vmin.f32 %v1169, %v1170
    %v1172 = vrot.slane %v1171, 2
    %v1173 = vmin.f32 %v1171, %v1172
    %v1174 = vrot.slane %v1173, 1
    %v1175 = vmin.f32 %v1173, %v1174
    %vm1176 = vcmp.eq.f32.partialorder %v44, %v1175
    %vm1177 = vcmp.eq.f32.partialorder %v45, %v1175
    %v1178 = vsel %vm1176, 1, 0
    %v1179 = vsel %vm1177, 1, 0
    %v1180 = vcvt.s32.f32 %v1178
    %v1181 = vcvt.s32.f32 %v1179
    %v1182 = vadd.f32 %v1148, %v1180
    %v1183 = vadd.f32 %v1149, %v1181
    %vm1184 = vcmp.gt.f32.partialorder %v1180, 0.0
    %vm1185 = vcmp.gt.f32.partialorder %v1181, 0.0
    %v1186 = vsel %vm1184, -inf, %v1152
    %v1187 = vsel %vm1185, -inf, %v1153
    %v1188 = vsel %vm235, %v1186, -inf
    %v1189 = vsel %vm235, %v1187, -inf
    %v1190 = vmax.f32 %v1188, %v1189
    %v1191 = vrot.slane %v1190, 4
    %v1192 = vmax.f32 %v1190, %v1191
    %v1193 = vrot.slane %v1192, 2
    %v1194 = vmax.f32 %v1192, %v1193
    %v1195 = vrot.slane %v1194, 1
    %v1196 = vmax.f32 %v1194, %v1195
    %vm1197 = vcmp.eq.f32.partialorder %v1186, %v1196
    %vm1198 = vcmp.eq.f32.partialorder %v1187, %v1196
    %v1199 = vsel %vm1197, %v44, 16.0
    %v1200 = vsel %vm1198, %v45, 16.0
    %v1201 = vsel %vm235, %v1199, inf
    %v1202 = vsel %vm235, %v1200, inf
    %v1203 = vmin.f32 %v1201, %v1202
    %v1204 = vrot.slane %v1203, 4
    %v1205 = vmin.f32 %v1203, %v1204
    %v1206 = vrot.slane %v1205, 2
    %v1207 = vmin.f32 %v1205, %v1206
    %v1208 = vrot.slane %v1207, 1
    %v1209 = vmin.f32 %v1207, %v1208
    %vm1210 = vcmp.eq.f32.partialorder %v44, %v1209
    %vm1211 = vcmp.eq.f32.partialorder %v45, %v1209
    %v1212 = vsel %vm1210, 1, 0
    %v1213 = vsel %vm1211, 1, 0
    %v1214 = vcvt.s32.f32 %v1212
    %v1215 = vcvt.s32.f32 %v1213
    %v1216 = vadd.f32 %v1182, %v1214
    %v1217 = vadd.f32 %v1183, %v1215
    %vm1218 = vcmp.gt.f32.partialorder %v1214, 0.0
    %vm1219 = vcmp.gt.f32.partialorder %v1215, 0.0
    %v1220 = vsel %vm1218, -inf, %v1186
    %v1221 = vsel %vm1219, -inf, %v1187
    %v1222 = vsel %vm235, %v1220, -inf
    %v1223 = vsel %vm235, %v1221, -inf
    %v1224 = vmax.f32 %v1222, %v1223
    %v1225 = vrot.slane %v1224, 4
    %v1226 = vmax.f32 %v1224, %v1225
    %v1227 = vrot.slane %v1226, 2
    %v1228 = vmax.f32 %v1226, %v1227
    %v1229 = vrot.slane %v1228, 1
    %v1230 = vmax.f32 %v1228, %v1229
    %vm1231 = vcmp.eq.f32.partialorder %v1220, %v1230
    %vm1232 = vcmp.eq.f32.partialorder %v1221, %v1230
    %v1233 = vsel %vm1231, %v44, 16.0
    %v1234 = vsel %vm1232, %v45, 16.0
    %v1235 = vsel %vm235, %v1233, inf
    %v1236 = vsel %vm235, %v1234, inf
    %v1237 = vmin.f32 %v1235, %v1236
    %v1238 = vrot.slane %v1237, 4
    %v1239 = vmin.f32 %v1237, %v1238
    %v1240 = vrot.slane %v1239, 2
    %v1241 = vmin.f32 %v1239, %v1240
    %v1242 = vrot.slane %v1241, 1
    %v1243 = vmin.f32 %v1241, %v1242
    %vm1244 = vcmp.eq.f32.partialorder %v44, %v1243
    %vm1245 = vcmp.eq.f32.partialorder %v45, %v1243
    %v1246 = vsel %vm1244, 1, 0
    %v1247 = vsel %vm1245, 1, 0
    %v1248 = vcvt.s32.f32 %v1246
    %v1249 = vcvt.s32.f32 %v1247
    %v1250 = vadd.f32 %v1216, %v1248
    %v1251 = vadd.f32 %v1217, %v1249
    %v1252 = vmul.f32 %v876, %v1250
    %v1253 = vmul.f32 %v877, %v1251
    %1255 = vset.pattern.permute.xlu0 0
    %1256 = vperm.xlu0 %1255, %v1252
    %v1257 = vpop.permute.xlu0 %1256
    %1260 = vset.pattern.permute.xlu0 0
    %1261 = vperm.xlu0 %1260, %v1253
    %v1262 = vpop.permute.xlu0 %1261
    %v1264 = vmul.f32 %v686, %v1257
    %v1265 = vmul.f32 %v687, %v1262
    %v1266 = vsel %vm50, %v1264, 0.0
    %v1267 = vsel %vm50, %v1265, 0.0
    %v1268 = vadd.f32 %v1266, %v1267
    %v1269 = vrot.slane %v1268, 4
    %v1270 = vadd.f32 %v1268, %v1269
    %v1271 = vrot.slane %v1270, 2
    %v1272 = vadd.f32 %v1270, %v1271
    %v1273 = vrot.slane %v1272, 1
    %v1274 = vadd.f32 %v1272, %v1273
    %v1275 = vmul.f32 %v1274, 0.09090909
    %vm1276 = vcmp.gt.f32.partialorder %v1250, 0.0
    %vm1277 = vcmp.gt.f32.partialorder %v1251, 0.0
    %v1278 = vsel %vm1276, 1, 0
    %v1279 = vsel %vm1277, 1, 0
    %1280 = vset.pattern.permute.xlu0 0
    %1281 = vperm.xlu0 %1280, %v1278
    %v1282 = vpop.permute.xlu0 %1281
    %1283 = vset.pattern.permute.xlu0 0
    %1284 = vperm.xlu0 %1283, %v1279
    %v1285 = vpop.permute.xlu0 %1284
    %vm1286 = vcmp.eq.s32.totalorder %v1282, 1
    %vm1287 = vcmp.eq.s32.totalorder %v1285, 1
    %v1288 = vsel %vm1286, %v1264, -inf
    %v1289 = vsel %vm1287, %v1265, -inf
    %v1290 = vsel %vm50, %v1288, -inf
    %v1291 = vsel %vm50, %v1289, -inf
    %v1292 = vmax.f32 %v1290, %v1291
    %v1293 = vrot.slane %v1292, 4
    %v1294 = vmax.f32 %v1292, %v1293
    %v1295 = vrot.slane %v1294, 2
    %v1296 = vmax.f32 %v1294, %v1295
    %v1297 = vrot.slane %v1296, 1
    %v1298 = vmax.f32 %v1296, %v1297
    %v1299 = vld [vmem:[%s4] sm:$0xff]
    %v1300 = vld [vmem:[%s4 + $0x8] sm:$0xff]
    %v1301 = vld [vmem:[%s4 + $0x10] sm:$0xff]
    %v1302 = vld [vmem:[%s4 + $0x18] sm:$0xff]
    %v1303 = vld [vmem:[%s4 + $0x20] sm:$0xff]
    %v1304 = vld [vmem:[%s4 + $0x28] sm:$0xff]
    %v1305 = vld [vmem:[%s4 + $0x30] sm:$0xff]
    %v1306 = vld [vmem:[%s4 + $0x38] sm:$0xff]
    %v1308 = vsel %vm50, %v1298, 0
    %1310 = vmatprep.subr.mxu0 0.0
    %1311 = vmatpush1.msra.mxu0 0.0
    %1312 = vmatprep.subr.mxu0 0.0
    %1313 = vmatpush1.msra.mxu0 0.0
    %1314 = vmatprep.subr.mxu0 0.0
    %1315 = vmatpush1.msra.mxu0 0.0
    %1316 = vmatprep.subr.mxu0 0.0
    %1317 = vmatpush1.msra.mxu0 0.0
    %1318 = vmatprep.subr.mxu0 0.0
    %1319 = vmatpush1.msra.mxu0 0.0
    %1320 = vmatprep.subr.mxu0 0.0
    %1321 = vmatpush1.msra.mxu0 0.0
    %1322 = vmatprep.subr.mxu0 0.0
    %1323 = vmatpush1.msra.mxu0 0.0
    %1324 = vmatprep.subr.mxu0 0.0
    %1325 = vmatpush1.msra.mxu0 0.0
    %1326 = vmatprep.subr.mxu0 0.0
    %1327 = vmatpush1.msra.mxu0 0.0
    %1328 = vmatprep.subr.mxu0 0.0
    %1329 = vmatpush1.msra.mxu0 0.0
    %1330 = vmatprep.subr.mxu0 0.0
    %1331 = vmatpush1.msra.mxu0 0.0
    %1332 = vmatprep.subr.mxu0 0.0
    %1333 = vmatpush1.msra.mxu0 0.0
    %1334 = vmatprep.subr.mxu0 0.0
    %1335 = vmatpush1.msra.mxu0 %v1306
    %1336 = vmatprep.subr.mxu0 0.0
    %1337 = vmatpush1.msra.mxu0 %v1305
    %1338 = vmatprep.subr.mxu0 0.0
    %1339 = vmatpush1.msra.mxu0 %v1304
    %1340 = vmatprep.subr.mxu0 0.0
    %1341 = vmatpush1.msra.mxu0 %v1303
    %1342 = vmatprep.subr.mxu0 0.0
    %1343 = vmatpush2.msra.mxu0 0.0
    %1344 = vmatprep.subr.mxu0 0.0
    %1345 = vmatpush2.msra.mxu0 0.0
    %1346 = vmatprep.subr.mxu0 0.0
    %1347 = vmatpush2.msra.mxu0 0.0
    %1348 = vmatprep.subr.mxu0 0.0
    %1349 = vmatpush2.msra.mxu0 0.0
    %1350 = vmatprep.subr.mxu0 0.0
    %1351 = vmatpush2.msra.mxu0 0.0
    %1352 = vmatprep.subr.mxu0 0.0
    %1353 = vmatpush2.msra.mxu0 0.0
    %1354 = vmatprep.subr.mxu0 0.0
    %1355 = vmatpush2.msra.mxu0 0.0
    %1356 = vmatprep.subr.mxu0 0.0
    %1357 = vmatpush2.msra.mxu0 0.0
    %1358 = vmatprep.subr.mxu0 0.0
    %1359 = vmatpush2.msra.mxu0 0.0
    %1360 = vmatprep.subr.mxu0 0.0
    %1361 = vmatpush2.msra.mxu0 0.0
    %1362 = vmatprep.subr.mxu0 0.0
    %1363 = vmatpush2.msra.mxu0 0.0
    %1364 = vmatprep.subr.mxu0 0.0
    %1365 = vmatpush2.msra.mxu0 0.0
    %1366 = vmatprep.subr.mxu0 0.0
    %1367 = vmatpush2.msra.mxu0 0.0
    %1368 = vmatprep.subr.mxu0 0.0
    %1369 = vmatpush2.msra.mxu0 0.0
    %1370 = vmatprep.subr.mxu0 0.0
    %1371 = vmatpush2.msra.mxu0 0.0
    %1372 = vmatprep.subr.mxu0 0.0
    %1373 = vmatpush2.msra.mxu0 0.0
    %1374 = vmatprep.mubr.f32.mxu0 0.0
    %1375 = vmatmul.mubr.f32.gmra.mxu0 %v1308
    %v1376 = vpop.f32.mrf.mxu0
    %v1377 = vadd.f32 0.0, %v1376
    %v1378 = vpop.f32.mrf.mxu0
    %1379 = vdwg.mxu0
    %v1381 = vsel %vm50, %v1275, 0
    %1383 = vmatprep.subr.mxu0 0.0
    %1384 = vmatpush1.msra.mxu0 0.0
    %1385 = vmatprep.subr.mxu0 0.0
    %1386 = vmatpush1.msra.mxu0 0.0
    %1387 = vmatprep.subr.mxu0 0.0
    %1388 = vmatpush1.msra.mxu0 0.0
    %1389 = vmatprep.subr.mxu0 0.0
    %1390 = vmatpush1.msra.mxu0 0.0
    %1391 = vmatprep.subr.mxu0 0.0
    %1392 = vmatpush1.msra.mxu0 0.0
    %1393 = vmatprep.subr.mxu0 0.0
    %1394 = vmatpush1.msra.mxu0 0.0
    %1395 = vmatprep.subr.mxu0 0.0
    %1396 = vmatpush1.msra.mxu0 0.0
    %1397 = vmatprep.subr.mxu0 0.0
    %1398 = vmatpush1.msra.mxu0 0.0
    %1399 = vmatprep.subr.mxu0 0.0
    %1400 = vmatpush1.msra.mxu0 0.0
    %1401 = vmatprep.subr.mxu0 0.0
    %1402 = vmatpush1.msra.mxu0 0.0
    %1403 = vmatprep.subr.mxu0 0.0
    %1404 = vmatpush1.msra.mxu0 0.0
    %1405 = vmatprep.subr.mxu0 0.0
    %1406 = vmatpush1.msra.mxu0 0.0
    %1407 = vmatprep.subr.mxu0 0.0
    %1408 = vmatpush1.msra.mxu0 %v1302
    %1409 = vmatprep.subr.mxu0 0.0
    %1410 = vmatpush1.msra.mxu0 %v1301
    %1411 = vmatprep.subr.mxu0 0.0
    %1412 = vmatpush1.msra.mxu0 %v1300
    %1413 = vmatprep.subr.mxu0 0.0
    %1414 = vmatpush1.msra.mxu0 %v1299
    %1415 = vmatprep.subr.mxu0 0.0
    %1416 = vmatpush2.msra.mxu0 0.0
    %1417 = vmatprep.subr.mxu0 0.0
    %1418 = vmatpush2.msra.mxu0 0.0
    %1419 = vmatprep.subr.mxu0 0.0
    %1420 = vmatpush2.msra.mxu0 0.0
    %1421 = vmatprep.subr.mxu0 0.0
    %1422 = vmatpush2.msra.mxu0 0.0
    %1423 = vmatprep.subr.mxu0 0.0
    %1424 = vmatpush2.msra.mxu0 0.0
    %1425 = vmatprep.subr.mxu0 0.0
    %1426 = vmatpush2.msra.mxu0 0.0
    %1427 = vmatprep.subr.mxu0 0.0
    %1428 = vmatpush2.msra.mxu0 0.0
    %1429 = vmatprep.subr.mxu0 0.0
    %1430 = vmatpush2.msra.mxu0 0.0
    %1431 = vmatprep.subr.mxu0 0.0
    %1432 = vmatpush2.msra.mxu0 0.0
    %1433 = vmatprep.subr.mxu0 0.0
    %1434 = vmatpush2.msra.mxu0 0.0
    %1435 = vmatprep.subr.mxu0 0.0
    %1436 = vmatpush2.msra.mxu0 0.0
    %1437 = vmatprep.subr.mxu0 0.0
    %1438 = vmatpush2.msra.mxu0 0.0
    %1439 = vmatprep.subr.mxu0 0.0
    %1440 = vmatpush2.msra.mxu0 0.0
    %1441 = vmatprep.subr.mxu0 0.0
    %1442 = vmatpush2.msra.mxu0 0.0
    %1443 = vmatprep.subr.mxu0 0.0
    %1444 = vmatpush2.msra.mxu0 0.0
    %1445 = vmatprep.subr.mxu0 0.0
    %1446 = vmatpush2.msra.mxu0 0.0
    %1447 = vmatprep.mubr.f32.mxu0 0.0
    %1448 = vmatmul.mubr.f32.gmra.mxu0 %v1381
    %v1449 = vpop.f32.mrf.mxu0
    %v1450 = vadd.f32 %v1377, %v1449
    %v1451 = vpop.f32.mrf.mxu0
    %1452 = vdwg.mxu0
    %v1453 = vld [vmem:[%s5] sm:$0x1]
    %v1454 = vadd.f32 %v1450, %v1453
    %vm1455 = vcmask 57344
    %1456 = vst.msk [vmem:[#allocation5] sm:$0x1] %vm1455, %v1454
    // Predicated region
    $region30: #{tpu_custom_call.1} parent=1 // pred_check
      _
    $region31: #{tpu_custom_call.1} parent=1 // pred_check_branch
      %1458 = sbr.rel (0) target = $region33
    $region32: #{tpu_custom_call.1} parent=1 // pred_region
      %s1460 = ssub.s32 16, 16
      %1461 = vsyncadd [#allocation3], %s1460
      %s1463 = sshll.u32 [#allocation5], 4
      %s1464 = int_to_ptr.vmem [resolvable:$true] %s1463
      %1466 = dma.vmem_to_hbm [thread:$0]  %s1464, 16, %s6, [#allocation3]
    $region33: #{tpu_custom_call.1} parent=1 // pred_fallthru
      _
    // Predicated region
    $region34: #{tpu_custom_call.1} parent=1 // pred_check
      _
    $region35: #{tpu_custom_call.1} parent=1 // pred_check_branch
      %1468 = sbr.rel (0) target = $region37
    $region36: #{tpu_custom_call.1} parent=1 // pred_region
      %1469 = dma.done [#allocation3], 16
    $region37: #{tpu_custom_call.1} parent=1 // pred_fallthru
      _
    %1470 = vsyncpa [#allocation3], 1
    %1471 = vsyncpa [#allocation4], 1

</llo_original>
